<compile_context>
chip_gen: v7x
topology: tpu7x:2x2x1
jax: 0.10.0
libtpu: 0.0.40
codegen_flags: <defaults>
</compile_context>

<pallas_src>
import jax
import jax.numpy as jnp
from jax import lax
from jax.experimental import pallas as pl
from jax.experimental.pallas import tpu as pltpu

_PAD = 8  # sublane-aligned column offset of the image inside the padded scratch


def _dwconv_kernel(x_ref, w_ref, b_ref, o_ref, xs_ref, acc_ref):
    # x_ref : (1, H, W, TC)    input block (no halo, no padding)
    # w_ref : (3, 3, TC)       depthwise taps for this channel tile
    # b_ref : (1, TC)          bias for this channel tile
    # o_ref : (1, H, W, TC)    output block
    # xs_ref: (H, W + 16, TC)  scratch: image at column offset _PAD, zero halo
    #                          columns at _PAD-1 and _PAD+W (in-kernel padding)
    # acc_ref: (H, W, TC) f32  accumulator
    H, W, TC = acc_ref.shape

    # ---- in-kernel zero padding (replaces the wrapper-side jnp.pad) --------
    zero_col = jnp.zeros((H, 1, TC), dtype=xs_ref.dtype)
    xs_ref[:, _PAD - 1:_PAD, :] = zero_col               # left halo column
    xs_ref[:, _PAD + W:_PAD + W + 1, :] = zero_col       # right halo column
    xs_ref[:, _PAD:_PAD + W, :] = x_ref[0]               # aligned copy of tile

    # ---- bias folded into the accumulator init -----------------------------
    acc_ref[...] = jnp.broadcast_to(b_ref[0].astype(jnp.float32), (H, W, TC))

    # ---- 9 taps -------------------------------------------------------------
    # Column offset dc = dw - 1 is handled by the W-shifted window (built once
    # per dw, reused for all 3 row taps).  Row offset dr = dh - 1 is handled by
    # tile-aligned leading-dim slices into the matching accumulator row range.
    for dw in range(3):
        # window[h, w] == x_padded[h, w + dw - 1]   (zeros outside the image)
        window = xs_ref[:, _PAD - 1 + dw:_PAD - 1 + dw + W, :]   # (H, W, TC)
        for dh in range(3):
            dr = dh - 1
            o_lo = max(0, -dr)          # first output row this tap touches
            i_lo = max(0, dr)           # first input row it reads
            L = H - abs(dr)
            if L <= 0:
                continue
            tap = w_ref[dh, dw, :].astype(jnp.float32)           # (TC,)
            patch = window[i_lo:i_lo + L].astype(jnp.float32)    # (L, W, TC)
            acc_ref[pl.ds(o_lo, L), :, :] += patch * tap

    o_ref[0] = acc_ref[...].astype(o_ref.dtype)


def dwconv_pallas(x, weight, bias, H, W):
    """Depthwise 3x3 conv, stride 1, padding 1 (DWConv forward).

    x: (B, N, C) with N == H * W.  weight: (3, 3, C).  bias: (C,).
    Returns (B, N, C).
    """
    B, N, C = x.shape
    assert N == H * W, "N must equal H * W"

    # Lane-dense channel tiles whenever possible.
    if C % 128 == 0:
        TC = 128
    else:
        TC = C  # small / ragged C: one full-channel tile (correct, lane-sparse)

    # Free, contiguous metadata reshapes only -- no pad / transpose in HBM.
    x_hwc = x.reshape(B, H, W, C)
    bias2d = bias.reshape(1, C)

    grid = (B, C // TC)

    # Explicit VMEM budget: double-buffered in + out blocks, padded-input
    # scratch, f32 accumulator (+ headroom).  Floor 32 MiB, cap 128 MiB.
    elt = jnp.dtype(x.dtype).itemsize
    blk = H * W * TC
    vmem_need = (2 * blk * elt            # input blocks (double-buffered)
                 + 2 * blk * elt          # output blocks (double-buffered)
                 + H * (W + 16) * TC * elt  # padded-input scratch
                 + blk * 4)               # f32 accumulator
    vmem_limit = int(min(max(int(vmem_need * 1.5), 32 * 1024 * 1024),
                         128 * 1024 * 1024))

    out = pl.pallas_call(
        _dwconv_kernel,
        out_shape=jax.ShapeDtypeStruct((B, H, W, C), x.dtype),
        grid_spec=pltpu.PrefetchScalarGridSpec(
            num_scalar_prefetch=0,
            grid=grid,
            in_specs=[
                pl.BlockSpec((1, H, W, TC), lambda b, c: (b, 0, 0, c)),
                pl.BlockSpec((3, 3, TC), lambda b, c: (0, 0, c)),
                pl.BlockSpec((1, TC), lambda b, c: (0, c)),
            ],
            out_specs=pl.BlockSpec((1, H, W, TC), lambda b, c: (b, 0, 0, c)),
            scratch_shapes=[
                pltpu.VMEM((H, W + 16, TC), x.dtype),     # padded-input stage
                pltpu.VMEM((H, W, TC), jnp.float32),      # accumulator
            ],
        ),
        compiler_params=pltpu.CompilerParams(
            dimension_semantics=("parallel", "parallel"),
            vmem_limit_bytes=vmem_limit,
        ),
    )(x_hwc, weight, bias2d)

    return out.reshape(B, N, C)


def dwconv_reference(x, weight, bias, H, W):
    """Pure-JAX reference mirroring the PyTorch module (NCHW depthwise conv)."""
    B, N, C = x.shape
    x_nchw = jnp.transpose(x, (0, 2, 1)).reshape(B, C, H, W)
    # torch depthwise weight shape: (C, 1, 3, 3); our weight is (3, 3, C)
    w_torch = jnp.transpose(weight, (2, 0, 1))[:, None, :, :]   # (C,1,3,3)
    y = lax.conv_general_dilated(
        x_nchw, w_torch,
        window_strides=(1, 1), padding=((1, 1), (1, 1)),
        dimension_numbers=("NCHW", "OIHW", "NCHW"),
        feature_group_count=C,
        precision=lax.Precision.HIGHEST)
    y = y + bias[None, :, None, None]
    return jnp.transpose(y.reshape(B, C, H * W), (0, 2, 1))


if __name__ == "__main__":
    key = jax.random.PRNGKey(0)

    # Main test: C a multiple of 128 -> lane-dense channel tiles, grid (B, C/128).
    B, C, H, W = 2, 256, 16, 16
    N = H * W
    kx, kw, kb = jax.random.split(key, 3)
    x = jax.random.normal(kx, (B, N, C), dtype=jnp.float32)
    weight = jax.random.normal(kw, (3, 3, C), dtype=jnp.float32) * 0.1
    bias = jax.random.normal(kb, (C,), dtype=jnp.float32) * 0.1

    out = dwconv_pallas(x, weight, bias, H, W)
    out = jax.block_until_ready(out)
    ref = dwconv_reference(x, weight, bias, H, W)
    assert out.shape == (B, N, C)
    assert jnp.allclose(out, ref, atol=1e-4, rtol=1e-4)

    # Secondary test: small C (not a multiple of 128) exercises the fallback
    # single-tile channel path.
    C2 = 4
    x2 = jax.random.normal(kx, (B, N, C2), dtype=jnp.float32)
    w2 = jax.random.normal(kw, (3, 3, C2), dtype=jnp.float32) * 0.1
    b2 = jax.random.normal(kb, (C2,), dtype=jnp.float32) * 0.1
    out2 = jax.block_until_ready(dwconv_pallas(x2, w2, b2, H, W))
    ref2 = dwconv_reference(x2, w2, b2, H, W)
    assert jnp.allclose(out2, ref2, atol=1e-4, rtol=1e-4)

    print("KERNEL_OK")
</pallas_src>

<mosaic_0001>
module attributes {stable_mosaic.version = 11 : i64} {
  func.func @_dwconv_kernel(%arg0: i32, %arg1: i32, %arg2: memref<1x16x16x128xf32, #tpu.memory_space<vmem>>, %arg3: memref<3x3x128xf32, #tpu.memory_space<vmem>>, %arg4: memref<1x128xf32, #tpu.memory_space<vmem>>, %arg5: memref<1x16x16x128xf32, #tpu.memory_space<vmem>>, %arg6: memref<16x32x128xf32, #tpu.memory_space<vmem>>, %arg7: memref<16x16x128xf32, #tpu.memory_space<vmem>>) attributes {dimension_semantics = [#tpu.dimension_semantics<parallel>, #tpu.dimension_semantics<parallel>], iteration_bounds = array<i64: 2, 2>, scalar_prefetch = 0 : i64, scratch_operands = 2 : i64, tpu.core_type = #tpu.core_type<tc>, window_params = [{transform_indices = @transform_0, window_bounds = array<i64: 1, 16, 16, 128>}, {transform_indices = @transform_1, window_bounds = array<i64: 3, 3, 128>}, {transform_indices = @transform_2, window_bounds = array<i64: 1, 128>}, {transform_indices = @transform_3, window_bounds = array<i64: 1, 16, 16, 128>}]} {
    %cst = arith.constant 0.000000e+00 : f32
    %0 = vector.broadcast %cst : f32 to vector<16x1x128xf32>
    %c0 = arith.constant 0 : index
    %c7 = arith.constant 7 : index
    %c0_0 = arith.constant 0 : index
    %1 = vector.load %arg6[%c0, %c7, %c0_0] : memref<16x32x128xf32, #tpu.memory_space<vmem>>, vector<16x1x128xf32>
    tpu.vector_store %arg6[%c0, %c7, %c0_0], %0 {strides = array<i32>} : memref<16x32x128xf32, #tpu.memory_space<vmem>>, vector<16x1x128xf32>,
    %c0_1 = arith.constant 0 : index
    %c24 = arith.constant 24 : index
    %c0_2 = arith.constant 0 : index
    %2 = vector.load %arg6[%c0_1, %c24, %c0_2] : memref<16x32x128xf32, #tpu.memory_space<vmem>>, vector<16x1x128xf32>
    tpu.vector_store %arg6[%c0_1, %c24, %c0_2], %0 {strides = array<i32>} : memref<16x32x128xf32, #tpu.memory_space<vmem>>, vector<16x1x128xf32>,
    %c0_3 = arith.constant 0 : index
    %c0_4 = arith.constant 0 : index
    %c0_5 = arith.constant 0 : index
    %c0_6 = arith.constant 0 : index
    %3 = vector.load %arg2[%c0_3, %c0_4, %c0_5, %c0_6] : memref<1x16x16x128xf32, #tpu.memory_space<vmem>>, vector<1x16x16x128xf32>
    %4 = vector.shape_cast %3 : vector<1x16x16x128xf32> to vector<16x16x128xf32>
    %c0_7 = arith.constant 0 : index
    %c8 = arith.constant 8 : index
    %c0_8 = arith.constant 0 : index
    %5 = vector.load %arg6[%c0_7, %c8, %c0_8] : memref<16x32x128xf32, #tpu.memory_space<vmem>>, vector<16x16x128xf32>
    tpu.vector_store %arg6[%c0_7, %c8, %c0_8], %4 {strides = array<i32>} : memref<16x32x128xf32, #tpu.memory_space<vmem>>, vector<16x16x128xf32>,
    %c0_9 = arith.constant 0 : index
    %c0_10 = arith.constant 0 : index
    %6 = vector.load %arg4[%c0_9, %c0_10] : memref<1x128xf32, #tpu.memory_space<vmem>>, vector<1x128xf32>
    %7 = vector.shape_cast %6 : vector<1x128xf32> to vector<128xf32>
    %8 = vector.shape_cast %7 : vector<128xf32> to vector<1x1x128xf32>
    %9 = vector.broadcast %8 : vector<1x1x128xf32> to vector<16x16x128xf32>
    %c0_11 = arith.constant 0 : index
    %c0_12 = arith.constant 0 : index
    %c0_13 = arith.constant 0 : index
    %10 = vector.load %arg7[%c0_11, %c0_12, %c0_13] : memref<16x16x128xf32, #tpu.memory_space<vmem>>, vector<16x16x128xf32>
    tpu.vector_store %arg7[%c0_11, %c0_12, %c0_13], %9 {strides = array<i32>} : memref<16x16x128xf32, #tpu.memory_space<vmem>>, vector<16x16x128xf32>,
    %c0_14 = arith.constant 0 : index
    %c7_15 = arith.constant 7 : index
    %c0_16 = arith.constant 0 : index
    %11 = vector.load %arg6[%c0_14, %c7_15, %c0_16] : memref<16x32x128xf32, #tpu.memory_space<vmem>>, vector<16x16x128xf32>
    %c0_17 = arith.constant 0 : index
    %c0_18 = arith.constant 0 : index
    %c0_19 = arith.constant 0 : index
    %12 = vector.load %arg3[%c0_17, %c0_18, %c0_19] : memref<3x3x128xf32, #tpu.memory_space<vmem>>, vector<1x1x128xf32>
    %13 = vector.shape_cast %12 : vector<1x1x128xf32> to vector<128xf32>
    %14 = vector.extract_strided_slice %11 {offsets = [0, 0, 0], sizes = [15, 16, 128], strides = [1, 1, 1]} : vector<16x16x128xf32> to vector<15x16x128xf32>
    %c1 = arith.constant 1 : index
    %c0_20 = arith.constant 0 : index
    %c0_21 = arith.constant 0 : index
    %15 = vector.load %arg7[%c1, %c0_20, %c0_21] : memref<16x16x128xf32, #tpu.memory_space<vmem>>, vector<15x16x128xf32>
    %16 = vector.shape_cast %13 : vector<128xf32> to vector<1x1x128xf32>
    %17 = vector.broadcast %16 : vector<1x1x128xf32> to vector<15x16x128xf32>
    %18 = arith.mulf %14, %17 : vector<15x16x128xf32>
    %19 = arith.addf %15, %18 : vector<15x16x128xf32>
    %c1_22 = arith.constant 1 : index
    %c0_23 = arith.constant 0 : index
    %c0_24 = arith.constant 0 : index
    %20 = vector.load %arg7[%c1_22, %c0_23, %c0_24] : memref<16x16x128xf32, #tpu.memory_space<vmem>>, vector<15x16x128xf32>
    tpu.vector_store %arg7[%c1_22, %c0_23, %c0_24], %19 {strides = array<i32>} : memref<16x16x128xf32, #tpu.memory_space<vmem>>, vector<15x16x128xf32>,
    %c1_25 = arith.constant 1 : index
    %c0_26 = arith.constant 0 : index
    %c0_27 = arith.constant 0 : index
    %21 = vector.load %arg3[%c1_25, %c0_26, %c0_27] : memref<3x3x128xf32, #tpu.memory_space<vmem>>, vector<1x1x128xf32>
    %22 = vector.shape_cast %21 : vector<1x1x128xf32> to vector<128xf32>
    %c0_28 = arith.constant 0 : index
    %c0_29 = arith.constant 0 : index
    %c0_30 = arith.constant 0 : index
    %23 = vector.load %arg7[%c0_28, %c0_29, %c0_30] : memref<16x16x128xf32, #tpu.memory_space<vmem>>, vector<16x16x128xf32>
    %24 = vector.shape_cast %22 : vector<128xf32> to vector<1x1x128xf32>
    %25 = vector.broadcast %24 : vector<1x1x128xf32> to vector<16x16x128xf32>
    %26 = arith.mulf %11, %25 : vector<16x16x128xf32>
    %27 = arith.addf %23, %26 : vector<16x16x128xf32>
    %c0_31 = arith.constant 0 : index
    %c0_32 = arith.constant 0 : index
    %c0_33 = arith.constant 0 : index
    %28 = vector.load %arg7[%c0_31, %c0_32, %c0_33] : memref<16x16x128xf32, #tpu.memory_space<vmem>>, vector<16x16x128xf32>
    tpu.vector_store %arg7[%c0_31, %c0_32, %c0_33], %27 {strides = array<i32>} : memref<16x16x128xf32, #tpu.memory_space<vmem>>, vector<16x16x128xf32>,
    %c2 = arith.constant 2 : index
    %c0_34 = arith.constant 0 : index
    %c0_35 = arith.constant 0 : index
    %29 = vector.load %arg3[%c2, %c0_34, %c0_35] : memref<3x3x128xf32, #tpu.memory_space<vmem>>, vector<1x1x128xf32>
    %30 = vector.shape_cast %29 : vector<1x1x128xf32> to vector<128xf32>
    %31 = vector.extract_strided_slice %11 {offsets = [1, 0, 0], sizes = [15, 16, 128], strides = [1, 1, 1]} : vector<16x16x128xf32> to vector<15x16x128xf32>
    %c0_36 = arith.constant 0 : index
    %c0_37 = arith.constant 0 : index
    %c0_38 = arith.constant 0 : index
    %32 = vector.load %arg7[%c0_36, %c0_37, %c0_38] : memref<16x16x128xf32, #tpu.memory_space<vmem>>, vector<15x16x128xf32>
    %33 = vector.shape_cast %30 : vector<128xf32> to vector<1x1x128xf32>
    %34 = vector.broadcast %33 : vector<1x1x128xf32> to vector<15x16x128xf32>
    %35 = arith.mulf %31, %34 : vector<15x16x128xf32>
    %36 = arith.addf %32, %35 : vector<15x16x128xf32>
    %c0_39 = arith.constant 0 : index
    %c0_40 = arith.constant 0 : index
    %c0_41 = arith.constant 0 : index
    %37 = vector.load %arg7[%c0_39, %c0_40, %c0_41] : memref<16x16x128xf32, #tpu.memory_space<vmem>>, vector<15x16x128xf32>
    tpu.vector_store %arg7[%c0_39, %c0_40, %c0_41], %36 {strides = array<i32>} : memref<16x16x128xf32, #tpu.memory_space<vmem>>, vector<15x16x128xf32>,
    %c0_42 = arith.constant 0 : index
    %c8_43 = arith.constant 8 : index
    %c0_44 = arith.constant 0 : index
    %38 = vector.load %arg6[%c0_42, %c8_43, %c0_44] : memref<16x32x128xf32, #tpu.memory_space<vmem>>, vector<16x16x128xf32>
    %c0_45 = arith.constant 0 : index
    %c1_46 = arith.constant 1 : index
    %c0_47 = arith.constant 0 : index
    %39 = vector.load %arg3[%c0_45, %c1_46, %c0_47] : memref<3x3x128xf32, #tpu.memory_space<vmem>>, vector<1x1x128xf32>
    %40 = vector.shape_cast %39 : vector<1x1x128xf32> to vector<128xf32>
    %41 = vector.extract_strided_slice %38 {offsets = [0, 0, 0], sizes = [15, 16, 128], strides = [1, 1, 1]} : vector<16x16x128xf32> to vector<15x16x128xf32>
    %c1_48 = arith.constant 1 : index
    %c0_49 = arith.constant 0 : index
    %c0_50 = arith.constant 0 : index
    %42 = vector.load %arg7[%c1_48, %c0_49, %c0_50] : memref<16x16x128xf32, #tpu.memory_space<vmem>>, vector<15x16x128xf32>
    %43 = vector.shape_cast %40 : vector<128xf32> to vector<1x1x128xf32>
    %44 = vector.broadcast %43 : vector<1x1x128xf32> to vector<15x16x128xf32>
    %45 = arith.mulf %41, %44 : vector<15x16x128xf32>
    %46 = arith.addf %42, %45 : vector<15x16x128xf32>
    %c1_51 = arith.constant 1 : index
    %c0_52 = arith.constant 0 : index
    %c0_53 = arith.constant 0 : index
    %47 = vector.load %arg7[%c1_51, %c0_52, %c0_53] : memref<16x16x128xf32, #tpu.memory_space<vmem>>, vector<15x16x128xf32>
    tpu.vector_store %arg7[%c1_51, %c0_52, %c0_53], %46 {strides = array<i32>} : memref<16x16x128xf32, #tpu.memory_space<vmem>>, vector<15x16x128xf32>,
    %c1_54 = arith.constant 1 : index
    %c1_55 = arith.constant 1 : index
    %c0_56 = arith.constant 0 : index
    %48 = vector.load %arg3[%c1_54, %c1_55, %c0_56] : memref<3x3x128xf32, #tpu.memory_space<vmem>>, vector<1x1x128xf32>
    %49 = vector.shape_cast %48 : vector<1x1x128xf32> to vector<128xf32>
    %c0_57 = arith.constant 0 : index
    %c0_58 = arith.constant 0 : index
    %c0_59 = arith.constant 0 : index
    %50 = vector.load %arg7[%c0_57, %c0_58, %c0_59] : memref<16x16x128xf32, #tpu.memory_space<vmem>>, vector<16x16x128xf32>
    %51 = vector.shape_cast %49 : vector<128xf32> to vector<1x1x128xf32>
    %52 = vector.broadcast %51 : vector<1x1x128xf32> to vector<16x16x128xf32>
    %53 = arith.mulf %38, %52 : vector<16x16x128xf32>
    %54 = arith.addf %50, %53 : vector<16x16x128xf32>
    %c0_60 = arith.constant 0 : index
    %c0_61 = arith.constant 0 : index
    %c0_62 = arith.constant 0 : index
    %55 = vector.load %arg7[%c0_60, %c0_61, %c0_62] : memref<16x16x128xf32, #tpu.memory_space<vmem>>, vector<16x16x128xf32>
    tpu.vector_store %arg7[%c0_60, %c0_61, %c0_62], %54 {strides = array<i32>} : memref<16x16x128xf32, #tpu.memory_space<vmem>>, vector<16x16x128xf32>,
    %c2_63 = arith.constant 2 : index
    %c1_64 = arith.constant 1 : index
    %c0_65 = arith.constant 0 : index
    %56 = vector.load %arg3[%c2_63, %c1_64, %c0_65] : memref<3x3x128xf32, #tpu.memory_space<vmem>>, vector<1x1x128xf32>
    %57 = vector.shape_cast %56 : vector<1x1x128xf32> to vector<128xf32>
    %58 = vector.extract_strided_slice %38 {offsets = [1, 0, 0], sizes = [15, 16, 128], strides = [1, 1, 1]} : vector<16x16x128xf32> to vector<15x16x128xf32>
    %c0_66 = arith.constant 0 : index
    %c0_67 = arith.constant 0 : index
    %c0_68 = arith.constant 0 : index
    %59 = vector.load %arg7[%c0_66, %c0_67, %c0_68] : memref<16x16x128xf32, #tpu.memory_space<vmem>>, vector<15x16x128xf32>
    %60 = vector.shape_cast %57 : vector<128xf32> to vector<1x1x128xf32>
    %61 = vector.broadcast %60 : vector<1x1x128xf32> to vector<15x16x128xf32>
    %62 = arith.mulf %58, %61 : vector<15x16x128xf32>
    %63 = arith.addf %59, %62 : vector<15x16x128xf32>
    %c0_69 = arith.constant 0 : index
    %c0_70 = arith.constant 0 : index
    %c0_71 = arith.constant 0 : index
    %64 = vector.load %arg7[%c0_69, %c0_70, %c0_71] : memref<16x16x128xf32, #tpu.memory_space<vmem>>, vector<15x16x128xf32>
    tpu.vector_store %arg7[%c0_69, %c0_70, %c0_71], %63 {strides = array<i32>} : memref<16x16x128xf32, #tpu.memory_space<vmem>>, vector<15x16x128xf32>,
    %c0_72 = arith.constant 0 : index
    %c9 = arith.constant 9 : index
    %c0_73 = arith.constant 0 : index
    %65 = vector.load %arg6[%c0_72, %c9, %c0_73] : memref<16x32x128xf32, #tpu.memory_space<vmem>>, vector<16x16x128xf32>
    %c0_74 = arith.constant 0 : index
    %c2_75 = arith.constant 2 : index
    %c0_76 = arith.constant 0 : index
    %66 = vector.load %arg3[%c0_74, %c2_75, %c0_76] : memref<3x3x128xf32, #tpu.memory_space<vmem>>, vector<1x1x128xf32>
    %67 = vector.shape_cast %66 : vector<1x1x128xf32> to vector<128xf32>
    %68 = vector.extract_strided_slice %65 {offsets = [0, 0, 0], sizes = [15, 16, 128], strides = [1, 1, 1]} : vector<16x16x128xf32> to vector<15x16x128xf32>
    %c1_77 = arith.constant 1 : index
    %c0_78 = arith.constant 0 : index
    %c0_79 = arith.constant 0 : index
    %69 = vector.load %arg7[%c1_77, %c0_78, %c0_79] : memref<16x16x128xf32, #tpu.memory_space<vmem>>, vector<15x16x128xf32>
    %70 = vector.shape_cast %67 : vector<128xf32> to vector<1x1x128xf32>
    %71 = vector.broadcast %70 : vector<1x1x128xf32> to vector<15x16x128xf32>
    %72 = arith.mulf %68, %71 : vector<15x16x128xf32>
    %73 = arith.addf %69, %72 : vector<15x16x128xf32>
    %c1_80 = arith.constant 1 : index
    %c0_81 = arith.constant 0 : index
    %c0_82 = arith.constant 0 : index
    %74 = vector.load %arg7[%c1_80, %c0_81, %c0_82] : memref<16x16x128xf32, #tpu.memory_space<vmem>>, vector<15x16x128xf32>
    tpu.vector_store %arg7[%c1_80, %c0_81, %c0_82], %73 {strides = array<i32>} : memref<16x16x128xf32, #tpu.memory_space<vmem>>, vector<15x16x128xf32>,
    %c1_83 = arith.constant 1 : index
    %c2_84 = arith.constant 2 : index
    %c0_85 = arith.constant 0 : index
    %75 = vector.load %arg3[%c1_83, %c2_84, %c0_85] : memref<3x3x128xf32, #tpu.memory_space<vmem>>, vector<1x1x128xf32>
    %76 = vector.shape_cast %75 : vector<1x1x128xf32> to vector<128xf32>
    %c0_86 = arith.constant 0 : index
    %c0_87 = arith.constant 0 : index
    %c0_88 = arith.constant 0 : index
    %77 = vector.load %arg7[%c0_86, %c0_87, %c0_88] : memref<16x16x128xf32, #tpu.memory_space<vmem>>, vector<16x16x128xf32>
    %78 = vector.shape_cast %76 : vector<128xf32> to vector<1x1x128xf32>
    %79 = vector.broadcast %78 : vector<1x1x128xf32> to vector<16x16x128xf32>
    %80 = arith.mulf %65, %79 : vector<16x16x128xf32>
    %81 = arith.addf %77, %80 : vector<16x16x128xf32>
    %c0_89 = arith.constant 0 : index
    %c0_90 = arith.constant 0 : index
    %c0_91 = arith.constant 0 : index
    %82 = vector.load %arg7[%c0_89, %c0_90, %c0_91] : memref<16x16x128xf32, #tpu.memory_space<vmem>>, vector<16x16x128xf32>
    tpu.vector_store %arg7[%c0_89, %c0_90, %c0_91], %81 {strides = array<i32>} : memref<16x16x128xf32, #tpu.memory_space<vmem>>, vector<16x16x128xf32>,
    %c2_92 = arith.constant 2 : index
    %c2_93 = arith.constant 2 : index
    %c0_94 = arith.constant 0 : index
    %83 = vector.load %arg3[%c2_92, %c2_93, %c0_94] : memref<3x3x128xf32, #tpu.memory_space<vmem>>, vector<1x1x128xf32>
    %84 = vector.shape_cast %83 : vector<1x1x128xf32> to vector<128xf32>
    %85 = vector.extract_strided_slice %65 {offsets = [1, 0, 0], sizes = [15, 16, 128], strides = [1, 1, 1]} : vector<16x16x128xf32> to vector<15x16x128xf32>
    %c0_95 = arith.constant 0 : index
    %c0_96 = arith.constant 0 : index
    %c0_97 = arith.constant 0 : index
    %86 = vector.load %arg7[%c0_95, %c0_96, %c0_97] : memref<16x16x128xf32, #tpu.memory_space<vmem>>, vector<15x16x128xf32>
    %87 = vector.shape_cast %84 : vector<128xf32> to vector<1x1x128xf32>
    %88 = vector.broadcast %87 : vector<1x1x128xf32> to vector<15x16x128xf32>
    %89 = arith.mulf %85, %88 : vector<15x16x128xf32>
    %90 = arith.addf %86, %89 : vector<15x16x128xf32>
    %c0_98 = arith.constant 0 : index
    %c0_99 = arith.constant 0 : index
    %c0_100 = arith.constant 0 : index
    %91 = vector.load %arg7[%c0_98, %c0_99, %c0_100] : memref<16x16x128xf32, #tpu.memory_space<vmem>>, vector<15x16x128xf32>
    tpu.vector_store %arg7[%c0_98, %c0_99, %c0_100], %90 {strides = array<i32>} : memref<16x16x128xf32, #tpu.memory_space<vmem>>, vector<15x16x128xf32>,
    %c0_101 = arith.constant 0 : index
    %c0_102 = arith.constant 0 : index
    %c0_103 = arith.constant 0 : index
    %92 = vector.load %arg7[%c0_101, %c0_102, %c0_103] : memref<16x16x128xf32, #tpu.memory_space<vmem>>, vector<16x16x128xf32>
    %c0_104 = arith.constant 0 : index
    %c0_105 = arith.constant 0 : index
    %c0_106 = arith.constant 0 : index
    %c0_107 = arith.constant 0 : index
    %93 = vector.load %arg5[%c0_104, %c0_105, %c0_106, %c0_107] : memref<1x16x16x128xf32, #tpu.memory_space<vmem>>, vector<1x16x16x128xf32>
    %94 = vector.shape_cast %93 : vector<1x16x16x128xf32> to vector<16x16x128xf32>
    %95 = vector.shape_cast %92 : vector<16x16x128xf32> to vector<1x16x16x128xf32>
    tpu.vector_store %arg5[%c0_104, %c0_105, %c0_106, %c0_107], %95 {strides = array<i32>} : memref<1x16x16x128xf32, #tpu.memory_space<vmem>>, vector<1x16x16x128xf32>,
    return
  }
  func.func @transform_0(%arg0: i32, %arg1: i32) -> (i32, i32, i32, i32) {
    %c0_i32 = arith.constant 0 : i32
    %c0_i32_0 = arith.constant 0 : i32
    %c0_i32_1 = arith.constant 0 : i32
    return %arg0, %c0_i32, %c0_i32_0, %arg1 : i32, i32, i32, i32
  }
  func.func @transform_1(%arg0: i32, %arg1: i32) -> (i32, i32, i32) {
    %c0_i32 = arith.constant 0 : i32
    %c0_i32_0 = arith.constant 0 : i32
    %c0_i32_1 = arith.constant 0 : i32
    return %c0_i32, %c0_i32_0, %arg1 : i32, i32, i32
  }
  func.func @transform_2(%arg0: i32, %arg1: i32) -> (i32, i32) {
    %c0_i32 = arith.constant 0 : i32
    %c0_i32_0 = arith.constant 0 : i32
    return %c0_i32, %arg1 : i32, i32
  }
  func.func @transform_3(%arg0: i32, %arg1: i32) -> (i32, i32, i32, i32) {
    %c0_i32 = arith.constant 0 : i32
    %c0_i32_0 = arith.constant 0 : i32
    %c0_i32_1 = arith.constant 0 : i32
    return %arg0, %c0_i32, %c0_i32_0, %arg1 : i32, i32, i32, i32
  }
}

</mosaic_0001>

<llo_original>
// kernel: tpu_custom_call.1
$region0: #{tpu_custom_call.1}
  #allocation0 [shape = 'u32[]', space=smem, size = 0x4, offset = 0x4, fixed_abs, tag = 'smem constant byte address 0x4 - core index']
  #allocation1 [shape = 'u32[144,128]{1,0:T(1,128)}', space=vmem, size = 0x12000, scoped, tag = 'internal scratch']
  #allocation2 [shape = 'f32[16,32,128]{2,1,0:T(8,128)}', space=vmem, size = 0x40000, scoped, tag = 'scratch operand']
  #allocation3 [shape = 'f32[16,16,128]{2,1,0:T(8,128)}', space=vmem, size = 0x20000, scoped, tag = 'scratch operand']
  %s0 = inlined_call_operand.hbm [shape: f32[2,16,16,256], index: 0, kind: input, shape index: {}]
  %s1 = inlined_call_operand.hbm [shape: f32[3,3,256], index: 1, kind: input, shape index: {}]
  %s2 = inlined_call_operand.vmem [shape: f32[1,256], index: 2, kind: input, shape index: {}]
  %s3 = inlined_call_operand.hbm [shape: f32[2,16,16,256], index: 3, kind: output, shape index: {}]
  %s4 = sld [smem:[#allocation0]]
  $region53: #{tpu_custom_call.1} parent=0
    _
  %s6 = ssub.s32 1, %s4
  %s7 = scalar_select 0, %s6, %s4
  $region1: #{tpu_custom_call.1} parent=0
    #allocation4 [shape = 'u8[262144]{0}', space=vmem, size = 0x40000, scoped, tag = 'input window, operand 0']
    #allocation5 [shape = 's32[2]{0}', space=sflag, size = 0x8, scoped, tag = 'scoped memory for tpu_custom_call.1']
    #allocation6 [shape = 's32[2]{0}', space=sflag, size = 0x8, scoped, tag = 'scoped memory for tpu_custom_call.1']
    #allocation7 [shape = 'u8[12288]{0}', space=vmem, size = 0x3000, scoped, tag = 'input window, operand 1']
    #allocation8 [shape = 's32[2]{0}', space=sflag, size = 0x8, scoped, tag = 'scoped memory for tpu_custom_call.1']
    #allocation9 [shape = 'u8[262144]{0}', space=vmem, size = 0x40000, scoped, tag = 'output window, operand 0']
    %8 = vsyncpa [#allocation5], 0
    %s9 = scalar_lea.sflag [#allocation5], 1
    %10 = vsyncpa %s9, 0
    %11 = vsyncpa [#allocation8], 0
    %s12 = scalar_lea.sflag [#allocation8], 1
    %13 = vsyncpa %s12, 0
    %14 = vsyncpa [#allocation6], 0
    %s15 = scalar_lea.sflag [#allocation6], 1
    %16 = vsyncpa %s15, 0
    loop: start=0, step=1, limit=6
    $region2: #{tpu_custom_call.1} parent=1 // loop_pre_header
      _
    $region3: #{tpu_custom_call.1} parent=1 // loop_header
      %s18 = sphi 0, %s22
      %p19 = scmp.ge.s32.totalorder %s18, 6
      %s25 = sphi 0, %s37
      %s26 = sphi 0, %s33
      %s27 = sphi 0, %s25
      %s28 = sphi 0, %s26
      %s29 = sphi 0, %s27
      %s30 = sphi 0, %s28
      %s42 = sphi 0, %s44
      %s45 = sphi 0, %s42
      %s46 = sphi 0, %s45
      %s62 = sphi 0, %s46
      %s68 = sphi 0, %s70
      %s71 = sphi 0, %s68
      %s72 = sphi 0, %s71
      %s88 = sphi 0, %s72
      %s94 = sphi 0, %s96
      %s97 = sphi 0, %s94
      %s98 = sphi 0, %s97
      %s114 = sphi 0, %s98
      %s122 = sphi 0, %s124
      %s125 = sphi 0, %s122
      %s126 = sphi 0, %s125
      %s142 = sphi 0, %s126
    $region4: #{tpu_custom_call.1} parent=1 // loop_header_branch
      %21 = sbr.rel (%p19) target = $region8
    $region5: #{tpu_custom_call.1} parent=1 // loop_body
      %s23 = ssub.s32 %s18, 1
      %s24 = ssub.s32 %s18, 2
      %s31 = sadd.s32 1, %s26
      %p32 = scmp.ge.s32.totalorder %s31, 2
      %s33 = scalar_select %p32, 0, %s31
      %s34 = sadd.s32 1, %s25
      %s35 = scalar_select %p32, %s34, %s25
      %p36 = scmp.ge.s32.totalorder %s35, 2
      %s37 = scalar_select %p36, 0, %s35
      %s38 = ssub.s32 %s25, %s37
      %s39 = ssub.s32 %s26, %s33
      %s40 = sor.u32 %s38, %s39
      %p41 = scmp.eq.s32.totalorder %s40, 0
      %s43 = sadd.s32 %s42, 1
      %s44 = scalar_select %p41, %s42, %s43
      %p47 = pneg %p41
      %p48 = scmp.eq.s32.totalorder %s18, 3
      %p49 = por %p47, %p48
      %p50 = scmp.ne.s32.totalorder %s42, %s45
      %p51 = scmp.eq.s32.totalorder %s18, 0
      %p52 = por %p50, %p51
      %p53 = scmp.ne.s32.totalorder %s42, %s45
      %p54 = scmp.eq.s32.totalorder %s23, 3
      %p55 = por %p53, %p54
      %p56 = scmp.ne.s32.totalorder %s45, %s46
      %p57 = scmp.eq.s32.totalorder %s23, 0
      %p58 = por %p56, %p57
      %p59 = scmp.ne.s32.totalorder %s45, %s46
      %p60 = scmp.eq.s32.totalorder %s24, 3
      %p61 = por %p59, %p60
      %p63 = scmp.ne.s32.totalorder %s46, %s62
      %p64 = scmp.eq.s32.totalorder %s24, 0
      %p65 = por %p63, %p64
      %s66 = ssub.s32 %s26, %s33
      %p67 = scmp.eq.s32.totalorder %s66, 0
      %s69 = sadd.s32 %s68, 1
      %s70 = scalar_select %p67, %s68, %s69
      %p73 = pneg %p67
      %p74 = scmp.eq.s32.totalorder %s18, 3
      %p75 = por %p73, %p74
      %p76 = scmp.ne.s32.totalorder %s68, %s71
      %p77 = scmp.eq.s32.totalorder %s18, 0
      %p78 = por %p76, %p77
      %p79 = scmp.ne.s32.totalorder %s68, %s71
      %p80 = scmp.eq.s32.totalorder %s23, 3
      %p81 = por %p79, %p80
      %p82 = scmp.ne.s32.totalorder %s71, %s72
      %p83 = scmp.eq.s32.totalorder %s23, 0
      %p84 = por %p82, %p83
      %p85 = scmp.ne.s32.totalorder %s71, %s72
      %p86 = scmp.eq.s32.totalorder %s24, 3
      %p87 = por %p85, %p86
      %p89 = scmp.ne.s32.totalorder %s72, %s88
      %p90 = scmp.eq.s32.totalorder %s24, 0
      %p91 = por %p89, %p90
      %s92 = ssub.s32 %s26, %s33
      %p93 = scmp.eq.s32.totalorder %s92, 0
      %s95 = sadd.s32 %s94, 1
      %s96 = scalar_select %p93, %s94, %s95
      %p99 = pneg %p93
      %p100 = scmp.eq.s32.totalorder %s18, 3
      %p101 = por %p99, %p100
      %p102 = scmp.ne.s32.totalorder %s94, %s97
      %p103 = scmp.eq.s32.totalorder %s18, 0
      %p104 = por %p102, %p103
      %p105 = scmp.ne.s32.totalorder %s94, %s97
      %p106 = scmp.eq.s32.totalorder %s23, 3
      %p107 = por %p105, %p106
      %p108 = scmp.ne.s32.totalorder %s97, %s98
      %p109 = scmp.eq.s32.totalorder %s23, 0
      %p110 = por %p108, %p109
      %p111 = scmp.ne.s32.totalorder %s97, %s98
      %p112 = scmp.eq.s32.totalorder %s24, 3
      %p113 = por %p111, %p112
      %p115 = scmp.ne.s32.totalorder %s98, %s114
      %p116 = scmp.eq.s32.totalorder %s24, 0
      %p117 = por %p115, %p116
      %s118 = ssub.s32 %s25, %s37
      %s119 = ssub.s32 %s26, %s33
      %s120 = sor.u32 %s118, %s119
      %p121 = scmp.eq.s32.totalorder %s120, 0
      %s123 = sadd.s32 %s122, 1
      %s124 = scalar_select %p121, %s122, %s123
      %p127 = pneg %p121
      %p128 = scmp.eq.s32.totalorder %s18, 3
      %p129 = por %p127, %p128
      %p130 = scmp.ne.s32.totalorder %s122, %s125
      %p131 = scmp.eq.s32.totalorder %s18, 0
      %p132 = por %p130, %p131
      %p133 = scmp.ne.s32.totalorder %s122, %s125
      %p134 = scmp.eq.s32.totalorder %s23, 3
      %p135 = por %p133, %p134
      %p136 = scmp.ne.s32.totalorder %s125, %s126
      %p137 = scmp.eq.s32.totalorder %s23, 0
      %p138 = por %p136, %p137
      %p139 = scmp.ne.s32.totalorder %s125, %s126
      %p140 = scmp.eq.s32.totalorder %s24, 3
      %p141 = por %p139, %p140
      %p143 = scmp.ne.s32.totalorder %s126, %s142
      %p144 = scmp.eq.s32.totalorder %s24, 0
      %p145 = por %p143, %p144
      %p146 = scmp.le.s32.totalorder 1, %s18
      %p147 = scmp.lt.s32.totalorder %s18, 5
      %p148 = pnand %p146, %p147
      %p149 = pneg %p148
      // Predicated region
      $region9: #{tpu_custom_call.1} parent=5 // pred_check
        _
      $region10: #{tpu_custom_call.1} parent=5 // pred_check_branch
        %151 = sbr.rel (%p148) target = $region12
      $region11: #{tpu_custom_call.1} parent=5 // pred_region
        %s152 = ssub.s32 %s18, 1
      $region12: #{tpu_custom_call.1} parent=5 // pred_fallthru
        _
      %p153 = scmp.lt.s32.totalorder %s18, 4
      // Predicated region
      $region13: #{tpu_custom_call.1} parent=5 // pred_check
        %p154 = pneg %p153
      $region14: #{tpu_custom_call.1} parent=5 // pred_check_branch
        %156 = sbr.rel (%p154) target = $region16
      $region15: #{tpu_custom_call.1} parent=5 // pred_region
        // Predicated region
        $region17: #{tpu_custom_call.1} parent=15 // pred_check
          %p157 = pneg %p52
        $region18: #{tpu_custom_call.1} parent=15 // pred_check_branch
          %159 = sbr.rel (%p157) target = $region20
        $region19: #{tpu_custom_call.1} parent=15 // pred_region
          %s160 = sand.u32 %s42, 1
          %s161 = scalar_lea.sflag [#allocation5], %s160
          %s162 = sand.u32 %s42, 1
          %s163 = smul.addr %s162, 256
          %s164 = scalar_lea.vmem [#allocation4], %s163
          %s166 = ssub.s32 4096, 4096
          %167 = vsyncadd %s161, %s166
          %s168 = smul.addr %s25, 64
          %s169 = sadd.s32 %s26, %s168
          %s170 = smul.addr %s169, 128
          %s171 = scalar_lea.hbm %s0, %s170
          %s172 = sshll.u32 %s164, 4
          %s173 = int_to_ptr.vmem [resolvable:$true] %s172
          %178 = dma.hbm_to_vmem [thread:$0]  %s171, 4096, %s173, %s161, 256, 128, 8
        $region20: #{tpu_custom_call.1} parent=15 // pred_fallthru
          _
        // Predicated region
        $region21: #{tpu_custom_call.1} parent=15 // pred_check
          %p179 = pneg %p78
        $region22: #{tpu_custom_call.1} parent=15 // pred_check_branch
          %181 = sbr.rel (%p179) target = $region24
        $region23: #{tpu_custom_call.1} parent=15 // pred_region
          %s182 = sand.u32 %s68, 1
          %s183 = scalar_lea.sflag [#allocation8], %s182
          %s184 = sand.u32 %s68, 1
          %s185 = smul.addr %s184, 12
          %s186 = scalar_lea.vmem [#allocation7], %s185
          %s188 = ssub.s32 192, 192
          %189 = vsyncadd %s183, %s188
          %s190 = smul.addr %s26, 64
          %s191 = scalar_lea.hbm %s1, %s190
          %s192 = sshll.u32 %s186, 4
          %s193 = int_to_ptr.vmem [resolvable:$true] %s192
          %198 = dma.hbm_to_vmem [thread:$0]  %s191, 192, %s193, %s183, 128, 64, 4
        $region24: #{tpu_custom_call.1} parent=15 // pred_fallthru
          _
        // Predicated region
        $region25: #{tpu_custom_call.1} parent=15 // pred_check
          %p199 = pneg %p104
        $region26: #{tpu_custom_call.1} parent=15 // pred_check_branch
          %201 = sbr.rel (%p199) target = $region28
        $region27: #{tpu_custom_call.1} parent=15 // pred_region
          %p202 = scmp.lt.s32.totalorder %s26, 1
          %s203 = scalar_select %p202, %s26, 1
          %s204 = scalar_lea.vmem %s2, %s203
        $region28: #{tpu_custom_call.1} parent=15 // pred_fallthru
          _
      $region16: #{tpu_custom_call.1} parent=5 // pred_fallthru
        _
      %p205 = scmp.le.s32.totalorder 1, %s18
      %p206 = scmp.lt.s32.totalorder %s18, 5
      %p207 = pnand %p205, %p206
      %p208 = pneg %p207
      // Predicated region
      $region29: #{tpu_custom_call.1} parent=5 // pred_check
        _
      $region30: #{tpu_custom_call.1} parent=5 // pred_check_branch
        %210 = sbr.rel (%p207) target = $region32
      $region31: #{tpu_custom_call.1} parent=5 // pred_region
        %s211 = ssub.s32 %s18, 1
        %s212 = sand.u32 %s45, 1
        %s213 = scalar_lea.sflag [#allocation5], %s212
        %s214 = sand.u32 %s45, 1
        %s215 = smul.addr %s214, 256
        %s216 = scalar_lea.vmem [#allocation4], %s215
        // Predicated region
        $region33: #{tpu_custom_call.1} parent=31 // pred_check
          %p217 = pneg %p58
        $region34: #{tpu_custom_call.1} parent=31 // pred_check_branch
          %219 = sbr.rel (%p217) target = $region36
        $region35: #{tpu_custom_call.1} parent=31 // pred_region
          %220 = dma.done %s213, 4096
        $region36: #{tpu_custom_call.1} parent=31 // pred_fallthru
          _
        %s221 = sand.u32 %s71, 1
        %s222 = scalar_lea.sflag [#allocation8], %s221
        %s223 = sand.u32 %s71, 1
        %s224 = smul.addr %s223, 12
        %s225 = scalar_lea.vmem [#allocation7], %s224
        // Predicated region
        $region37: #{tpu_custom_call.1} parent=31 // pred_check
          %p226 = pneg %p84
        $region38: #{tpu_custom_call.1} parent=31 // pred_check_branch
          %228 = sbr.rel (%p226) target = $region40
        $region39: #{tpu_custom_call.1} parent=31 // pred_region
          %229 = dma.done %s222, 192
        $region40: #{tpu_custom_call.1} parent=31 // pred_fallthru
          _
        %s230 = sand.u32 %s45, 1
        %s231 = scalar_lea.sflag [#allocation5], %s230
        %s232 = sand.u32 %s45, 1
        %s233 = smul.addr %s232, 256
        %s234 = scalar_lea.vmem [#allocation4], %s233
        %p235 = pneg %p58
        %p236 = pneg %p55
        %s237 = sand.u32 %s71, 1
        %s238 = scalar_lea.sflag [#allocation8], %s237
        %s239 = sand.u32 %s71, 1
        %s240 = smul.addr %s239, 12
        %s241 = scalar_lea.vmem [#allocation7], %s240
        %p242 = pneg %p84
        %p243 = pneg %p81
        %p244 = scmp.lt.s32.totalorder %s28, 1
        %s245 = scalar_select %p244, %s28, 1
        %s246 = scalar_lea.vmem %s2, %s245
        %p247 = pneg %p110
        %p248 = pneg %p107
        %p249 = pneg %p138
        %p250 = pneg %p135
        %s251 = sand.u32 %s125, 1
        %s252 = scalar_lea.sflag [#allocation6], %s251
        %s253 = sand.u32 %s125, 1
        %s254 = smul.addr %s253, 256
        %s255 = scalar_lea.vmem [#allocation9], %s254
        %p256 = scmp.lt.s32.totalorder %s28, 1
        %s257 = scalar_select %p256, %s28, 1
        %s258 = scalar_lea.vmem %s2, %s257
        %259 = vst [vmem:[#allocation2 + $0x7] sm:$0x1] 0.0
        %260 = vst [vmem:[#allocation2 + $0x27] sm:$0x1] 0.0
        %261 = vst [vmem:[#allocation2 + $0x47] sm:$0x1] 0.0
        %262 = vst [vmem:[#allocation2 + $0x67] sm:$0x1] 0.0
        %263 = vst [vmem:[#allocation2 + $0x87] sm:$0x1] 0.0
        %264 = vst [vmem:[#allocation2 + $0xa7] sm:$0x1] 0.0
        %265 = vst [vmem:[#allocation2 + $0xc7] sm:$0x1] 0.0
        %266 = vst [vmem:[#allocation2 + $0xe7] sm:$0x1] 0.0
        %267 = vst [vmem:[#allocation2 + $0x107] sm:$0x1] 0.0
        %268 = vst [vmem:[#allocation2 + $0x127] sm:$0x1] 0.0
        %269 = vst [vmem:[#allocation2 + $0x147] sm:$0x1] 0.0
        %270 = vst [vmem:[#allocation2 + $0x167] sm:$0x1] 0.0
        %271 = vst [vmem:[#allocation2 + $0x187] sm:$0x1] 0.0
        %272 = vst [vmem:[#allocation2 + $0x1a7] sm:$0x1] 0.0
        %273 = vst [vmem:[#allocation2 + $0x1c7] sm:$0x1] 0.0
        %274 = vst [vmem:[#allocation2 + $0x1e7] sm:$0x1] 0.0
        %275 = vst [vmem:[#allocation2 + $0x18] sm:$0x1] 0.0
        %276 = vst [vmem:[#allocation2 + $0x38] sm:$0x1] 0.0
        %277 = vst [vmem:[#allocation2 + $0x58] sm:$0x1] 0.0
        %278 = vst [vmem:[#allocation2 + $0x78] sm:$0x1] 0.0
        %279 = vst [vmem:[#allocation2 + $0x98] sm:$0x1] 0.0
        %280 = vst [vmem:[#allocation2 + $0xb8] sm:$0x1] 0.0
        %281 = vst [vmem:[#allocation2 + $0xd8] sm:$0x1] 0.0
        %282 = vst [vmem:[#allocation2 + $0xf8] sm:$0x1] 0.0
        %283 = vst [vmem:[#allocation2 + $0x118] sm:$0x1] 0.0
        %284 = vst [vmem:[#allocation2 + $0x138] sm:$0x1] 0.0
        %285 = vst [vmem:[#allocation2 + $0x158] sm:$0x1] 0.0
        %286 = vst [vmem:[#allocation2 + $0x178] sm:$0x1] 0.0
        %287 = vst [vmem:[#allocation2 + $0x198] sm:$0x1] 0.0
        %288 = vst [vmem:[#allocation2 + $0x1b8] sm:$0x1] 0.0
        %289 = vst [vmem:[#allocation2 + $0x1d8] sm:$0x1] 0.0
        %290 = vst [vmem:[#allocation2 + $0x1f8] sm:$0x1] 0.0
        %v291 = vld [vmem:[%s216] sm:$0xff]
        %v292 = vld [vmem:[%s216 + $0x8] sm:$0xff]
        %v293 = vld [vmem:[%s216 + $0x10] sm:$0xff]
        %v294 = vld [vmem:[%s216 + $0x18] sm:$0xff]
        %v295 = vld [vmem:[%s216 + $0x20] sm:$0xff]
        %v296 = vld [vmem:[%s216 + $0x28] sm:$0xff]
        %v297 = vld [vmem:[%s216 + $0x30] sm:$0xff]
        %v298 = vld [vmem:[%s216 + $0x38] sm:$0xff]
        %v299 = vld [vmem:[%s216 + $0x40] sm:$0xff]
        %v300 = vld [vmem:[%s216 + $0x48] sm:$0xff]
        %v301 = vld [vmem:[%s216 + $0x50] sm:$0xff]
        %v302 = vld [vmem:[%s216 + $0x58] sm:$0xff]
        %v303 = vld [vmem:[%s216 + $0x60] sm:$0xff]
        %v304 = vld [vmem:[%s216 + $0x68] sm:$0xff]
        %v305 = vld [vmem:[%s216 + $0x70] sm:$0xff]
        %v306 = vld [vmem:[%s216 + $0x78] sm:$0xff]
        %v307 = vld [vmem:[%s216 + $0x80] sm:$0xff]
        %v308 = vld [vmem:[%s216 + $0x88] sm:$0xff]
        %v309 = vld [vmem:[%s216 + $0x90] sm:$0xff]
        %v310 = vld [vmem:[%s216 + $0x98] sm:$0xff]
        %v311 = vld [vmem:[%s216 + $0xa0] sm:$0xff]
        %v312 = vld [vmem:[%s216 + $0xa8] sm:$0xff]
        %v313 = vld [vmem:[%s216 + $0xb0] sm:$0xff]
        %v314 = vld [vmem:[%s216 + $0xb8] sm:$0xff]
        %v315 = vld [vmem:[%s216 + $0xc0] sm:$0xff]
        %v316 = vld [vmem:[%s216 + $0xc8] sm:$0xff]
        %v317 = vld [vmem:[%s216 + $0xd0] sm:$0xff]
        %v318 = vld [vmem:[%s216 + $0xd8] sm:$0xff]
        %v319 = vld [vmem:[%s216 + $0xe0] sm:$0xff]
        %v320 = vld [vmem:[%s216 + $0xe8] sm:$0xff]
        %v321 = vld [vmem:[%s216 + $0xf0] sm:$0xff]
        %v322 = vld [vmem:[%s216 + $0xf8] sm:$0xff]
        %323 = vst [vmem:[#allocation2 + $0x8] sm:$0xff] %v291
        %324 = vst [vmem:[#allocation2 + $0x10] sm:$0xff] %v292
        %325 = vst [vmem:[#allocation2 + $0x28] sm:$0xff] %v293
        %326 = vst [vmem:[#allocation2 + $0x30] sm:$0xff] %v294
        %327 = vst [vmem:[#allocation2 + $0x48] sm:$0xff] %v295
        %328 = vst [vmem:[#allocation2 + $0x50] sm:$0xff] %v296
        %329 = vst [vmem:[#allocation2 + $0x68] sm:$0xff] %v297
        %330 = vst [vmem:[#allocation2 + $0x70] sm:$0xff] %v298
        %331 = vst [vmem:[#allocation2 + $0x88] sm:$0xff] %v299
        %332 = vst [vmem:[#allocation2 + $0x90] sm:$0xff] %v300
        %333 = vst [vmem:[#allocation2 + $0xa8] sm:$0xff] %v301
        %334 = vst [vmem:[#allocation2 + $0xb0] sm:$0xff] %v302
        %335 = vst [vmem:[#allocation2 + $0xc8] sm:$0xff] %v303
        %336 = vst [vmem:[#allocation2 + $0xd0] sm:$0xff] %v304
        %337 = vst [vmem:[#allocation2 + $0xe8] sm:$0xff] %v305
        %338 = vst [vmem:[#allocation2 + $0xf0] sm:$0xff] %v306
        %339 = vst [vmem:[#allocation2 + $0x108] sm:$0xff] %v307
        %340 = vst [vmem:[#allocation2 + $0x110] sm:$0xff] %v308
        %341 = vst [vmem:[#allocation2 + $0x128] sm:$0xff] %v309
        %342 = vst [vmem:[#allocation2 + $0x130] sm:$0xff] %v310
        %343 = vst [vmem:[#allocation2 + $0x148] sm:$0xff] %v311
        %344 = vst [vmem:[#allocation2 + $0x150] sm:$0xff] %v312
        %345 = vst [vmem:[#allocation2 + $0x168] sm:$0xff] %v313
        %346 = vst [vmem:[#allocation2 + $0x170] sm:$0xff] %v314
        %347 = vst [vmem:[#allocation2 + $0x188] sm:$0xff] %v315
        %348 = vst [vmem:[#allocation2 + $0x190] sm:$0xff] %v316
        %349 = vst [vmem:[#allocation2 + $0x1a8] sm:$0xff] %v317
        %350 = vst [vmem:[#allocation2 + $0x1b0] sm:$0xff] %v318
        %351 = vst [vmem:[#allocation2 + $0x1c8] sm:$0xff] %v319
        %352 = vst [vmem:[#allocation2 + $0x1d0] sm:$0xff] %v320
        %353 = vst [vmem:[#allocation2 + $0x1e8] sm:$0xff] %v321
        %354 = vst [vmem:[#allocation2 + $0x1f0] sm:$0xff] %v322
        %v355 = vld [vmem:[%s258] sm:$0x1]
        %v357 = vlaneseq
        %v358 = vshrl.u32 %v357, 7
        %v359 = vsub.s32 0, %v358
        %v360 = vrot.slane %v355, %v359
        %362 = vst [vmem:[#allocation3] sm:$0xff] %v360
        %363 = vst [vmem:[#allocation3 + $0x8] sm:$0xff] %v360
        %364 = vst [vmem:[#allocation3 + $0x10] sm:$0xff] %v360
        %365 = vst [vmem:[#allocation3 + $0x18] sm:$0xff] %v360
        %366 = vst [vmem:[#allocation3 + $0x20] sm:$0xff] %v360
        %367 = vst [vmem:[#allocation3 + $0x28] sm:$0xff] %v360
        %368 = vst [vmem:[#allocation3 + $0x30] sm:$0xff] %v360
        %369 = vst [vmem:[#allocation3 + $0x38] sm:$0xff] %v360
        %370 = vst [vmem:[#allocation3 + $0x40] sm:$0xff] %v360
        %371 = vst [vmem:[#allocation3 + $0x48] sm:$0xff] %v360
        %372 = vst [vmem:[#allocation3 + $0x50] sm:$0xff] %v360
        %373 = vst [vmem:[#allocation3 + $0x58] sm:$0xff] %v360
        %374 = vst [vmem:[#allocation3 + $0x60] sm:$0xff] %v360
        %375 = vst [vmem:[#allocation3 + $0x68] sm:$0xff] %v360
        %376 = vst [vmem:[#allocation3 + $0x70] sm:$0xff] %v360
        %377 = vst [vmem:[#allocation3 + $0x78] sm:$0xff] %v360
        %378 = vst [vmem:[#allocation3 + $0x80] sm:$0xff] %v360
        %379 = vst [vmem:[#allocation3 + $0x88] sm:$0xff] %v360
        %380 = vst [vmem:[#allocation3 + $0x90] sm:$0xff] %v360
        %381 = vst [vmem:[#allocation3 + $0x98] sm:$0xff] %v360
        %382 = vst [vmem:[#allocation3 + $0xa0] sm:$0xff] %v360
        %383 = vst [vmem:[#allocation3 + $0xa8] sm:$0xff] %v360
        %384 = vst [vmem:[#allocation3 + $0xb0] sm:$0xff] %v360
        %385 = vst [vmem:[#allocation3 + $0xb8] sm:$0xff] %v360
        %386 = vst [vmem:[#allocation3 + $0xc0] sm:$0xff] %v360
        %387 = vst [vmem:[#allocation3 + $0xc8] sm:$0xff] %v360
        %388 = vst [vmem:[#allocation3 + $0xd0] sm:$0xff] %v360
        %389 = vst [vmem:[#allocation3 + $0xd8] sm:$0xff] %v360
        %390 = vst [vmem:[#allocation3 + $0xe0] sm:$0xff] %v360
        %391 = vst [vmem:[#allocation3 + $0xe8] sm:$0xff] %v360
        %392 = vst [vmem:[#allocation3 + $0xf0] sm:$0xff] %v360
        %393 = vst [vmem:[#allocation3 + $0xf8] sm:$0xff] %v360
        %v394 = vld [vmem:[#allocation2 + $0x7] sm:$0xff]
        %v395 = vld [vmem:[#allocation2 + $0xf] sm:$0xff]
        %v396 = vld [vmem:[#allocation2 + $0x27] sm:$0xff]
        %v397 = vld [vmem:[#allocation2 + $0x2f] sm:$0xff]
        %v398 = vld [vmem:[#allocation2 + $0x47] sm:$0xff]
        %v399 = vld [vmem:[#allocation2 + $0x4f] sm:$0xff]
        %v400 = vld [vmem:[#allocation2 + $0x67] sm:$0xff]
        %v401 = vld [vmem:[#allocation2 + $0x6f] sm:$0xff]
        %v402 = vld [vmem:[#allocation2 + $0x87] sm:$0xff]
        %v403 = vld [vmem:[#allocation2 + $0x8f] sm:$0xff]
        %v404 = vld [vmem:[#allocation2 + $0xa7] sm:$0xff]
        %v405 = vld [vmem:[#allocation2 + $0xaf] sm:$0xff]
        %v406 = vld [vmem:[#allocation2 + $0xc7] sm:$0xff]
        %v407 = vld [vmem:[#allocation2 + $0xcf] sm:$0xff]
        %v408 = vld [vmem:[#allocation2 + $0xe7] sm:$0xff]
        %v409 = vld [vmem:[#allocation2 + $0xef] sm:$0xff]
        %v410 = vld [vmem:[#allocation2 + $0x107] sm:$0xff]
        %v411 = vld [vmem:[#allocation2 + $0x10f] sm:$0xff]
        %v412 = vld [vmem:[#allocation2 + $0x127] sm:$0xff]
        %v413 = vld [vmem:[#allocation2 + $0x12f] sm:$0xff]
        %v414 = vld [vmem:[#allocation2 + $0x147] sm:$0xff]
        %v415 = vld [vmem:[#allocation2 + $0x14f] sm:$0xff]
        %v416 = vld [vmem:[#allocation2 + $0x167] sm:$0xff]
        %v417 = vld [vmem:[#allocation2 + $0x16f] sm:$0xff]
        %v418 = vld [vmem:[#allocation2 + $0x187] sm:$0xff]
        %v419 = vld [vmem:[#allocation2 + $0x18f] sm:$0xff]
        %v420 = vld [vmem:[#allocation2 + $0x1a7] sm:$0xff]
        %v421 = vld [vmem:[#allocation2 + $0x1af] sm:$0xff]
        %v422 = vld [vmem:[#allocation2 + $0x1c7] sm:$0xff]
        %v423 = vld [vmem:[#allocation2 + $0x1cf] sm:$0xff]
        %v424 = vld [vmem:[#allocation2 + $0x1e7] sm:$0xff]
        %v425 = vld [vmem:[#allocation2 + $0x1ef] sm:$0xff]
        %v426 = vld [vmem:[%s225] sm:$0x1]
        %s427 = scalar_lea.vmem [#allocation3], 16
        %v428 = vld [vmem:[%s427] sm:$0xff]
        %v429 = vld [vmem:[%s427 + $0x8] sm:$0xff]
        %v430 = vld [vmem:[%s427 + $0x10] sm:$0xff]
        %v431 = vld [vmem:[%s427 + $0x18] sm:$0xff]
        %v432 = vld [vmem:[%s427 + $0x20] sm:$0xff]
        %v433 = vld [vmem:[%s427 + $0x28] sm:$0xff]
        %v434 = vld [vmem:[%s427 + $0x30] sm:$0xff]
        %v435 = vld [vmem:[%s427 + $0x38] sm:$0xff]
        %v436 = vld [vmem:[%s427 + $0x40] sm:$0xff]
        %v437 = vld [vmem:[%s427 + $0x48] sm:$0xff]
        %v438 = vld [vmem:[%s427 + $0x50] sm:$0xff]
        %v439 = vld [vmem:[%s427 + $0x58] sm:$0xff]
        %v440 = vld [vmem:[%s427 + $0x60] sm:$0xff]
        %v441 = vld [vmem:[%s427 + $0x68] sm:$0xff]
        %v442 = vld [vmem:[%s427 + $0x70] sm:$0xff]
        %v443 = vld [vmem:[%s427 + $0x78] sm:$0xff]
        %v444 = vld [vmem:[%s427 + $0x80] sm:$0xff]
        %v445 = vld [vmem:[%s427 + $0x88] sm:$0xff]
        %v446 = vld [vmem:[%s427 + $0x90] sm:$0xff]
        %v447 = vld [vmem:[%s427 + $0x98] sm:$0xff]
        %v448 = vld [vmem:[%s427 + $0xa0] sm:$0xff]
        %v449 = vld [vmem:[%s427 + $0xa8] sm:$0xff]
        %v450 = vld [vmem:[%s427 + $0xb0] sm:$0xff]
        %v451 = vld [vmem:[%s427 + $0xb8] sm:$0xff]
        %v452 = vld [vmem:[%s427 + $0xc0] sm:$0xff]
        %v453 = vld [vmem:[%s427 + $0xc8] sm:$0xff]
        %v454 = vld [vmem:[%s427 + $0xd0] sm:$0xff]
        %v455 = vld [vmem:[%s427 + $0xd8] sm:$0xff]
        %v456 = vld [vmem:[%s427 + $0xe0] sm:$0xff]
        %v457 = vld [vmem:[%s427 + $0xe8] sm:$0xff]
        %v458 = vlaneseq
        %v459 = vshrl.u32 %v458, 7
        %v460 = vsub.s32 0, %v459
        %v461 = vrot.slane %v426, %v460
        %v462 = vmul.f32 %v394, %v461
        %v463 = vmul.f32 %v395, %v461
        %v464 = vmul.f32 %v396, %v461
        %v465 = vmul.f32 %v397, %v461
        %v466 = vmul.f32 %v398, %v461
        %v467 = vmul.f32 %v399, %v461
        %v468 = vmul.f32 %v400, %v461
        %v469 = vmul.f32 %v401, %v461
        %v470 = vmul.f32 %v402, %v461
        %v471 = vmul.f32 %v403, %v461
        %v472 = vmul.f32 %v404, %v461
        %v473 = vmul.f32 %v405, %v461
        %v474 = vmul.f32 %v406, %v461
        %v475 = vmul.f32 %v407, %v461
        %v476 = vmul.f32 %v408, %v461
        %v477 = vmul.f32 %v409, %v461
        %v478 = vmul.f32 %v410, %v461
        %v479 = vmul.f32 %v411, %v461
        %v480 = vmul.f32 %v412, %v461
        %v481 = vmul.f32 %v413, %v461
        %v482 = vmul.f32 %v414, %v461
        %v483 = vmul.f32 %v415, %v461
        %v484 = vmul.f32 %v416, %v461
        %v485 = vmul.f32 %v417, %v461
        %v486 = vmul.f32 %v418, %v461
        %v487 = vmul.f32 %v419, %v461
        %v488 = vmul.f32 %v420, %v461
        %v489 = vmul.f32 %v421, %v461
        %v490 = vmul.f32 %v422, %v461
        %v491 = vmul.f32 %v423, %v461
        %v492 = vadd.f32 %v428, %v462
        %v493 = vadd.f32 %v429, %v463
        %v494 = vadd.f32 %v430, %v464
        %v495 = vadd.f32 %v431, %v465
        %v496 = vadd.f32 %v432, %v466
        %v497 = vadd.f32 %v433, %v467
        %v498 = vadd.f32 %v434, %v468
        %v499 = vadd.f32 %v435, %v469
        %v500 = vadd.f32 %v436, %v470
        %v501 = vadd.f32 %v437, %v471
        %v502 = vadd.f32 %v438, %v472
        %v503 = vadd.f32 %v439, %v473
        %v504 = vadd.f32 %v440, %v474
        %v505 = vadd.f32 %v441, %v475
        %v506 = vadd.f32 %v442, %v476
        %v507 = vadd.f32 %v443, %v477
        %v508 = vadd.f32 %v444, %v478
        %v509 = vadd.f32 %v445, %v479
        %v510 = vadd.f32 %v446, %v480
        %v511 = vadd.f32 %v447, %v481
        %v512 = vadd.f32 %v448, %v482
        %v513 = vadd.f32 %v449, %v483
        %v514 = vadd.f32 %v450, %v484
        %v515 = vadd.f32 %v451, %v485
        %v516 = vadd.f32 %v452, %v486
        %v517 = vadd.f32 %v453, %v487
        %v518 = vadd.f32 %v454, %v488
        %v519 = vadd.f32 %v455, %v489
        %v520 = vadd.f32 %v456, %v490
        %v521 = vadd.f32 %v457, %v491
        %522 = vst [vmem:[%s427] sm:$0xff] %v492
        %523 = vst [vmem:[%s427 + $0x8] sm:$0xff] %v493
        %524 = vst [vmem:[%s427 + $0x10] sm:$0xff] %v494
        %525 = vst [vmem:[%s427 + $0x18] sm:$0xff] %v495
        %526 = vst [vmem:[%s427 + $0x20] sm:$0xff] %v496
        %527 = vst [vmem:[%s427 + $0x28] sm:$0xff] %v497
        %528 = vst [vmem:[%s427 + $0x30] sm:$0xff] %v498
        %529 = vst [vmem:[%s427 + $0x38] sm:$0xff] %v499
        %530 = vst [vmem:[%s427 + $0x40] sm:$0xff] %v500
        %531 = vst [vmem:[%s427 + $0x48] sm:$0xff] %v501
        %532 = vst [vmem:[%s427 + $0x50] sm:$0xff] %v502
        %533 = vst [vmem:[%s427 + $0x58] sm:$0xff] %v503
        %534 = vst [vmem:[%s427 + $0x60] sm:$0xff] %v504
        %535 = vst [vmem:[%s427 + $0x68] sm:$0xff] %v505
        %536 = vst [vmem:[%s427 + $0x70] sm:$0xff] %v506
        %537 = vst [vmem:[%s427 + $0x78] sm:$0xff] %v507
        %538 = vst [vmem:[%s427 + $0x80] sm:$0xff] %v508
        %539 = vst [vmem:[%s427 + $0x88] sm:$0xff] %v509
        %540 = vst [vmem:[%s427 + $0x90] sm:$0xff] %v510
        %541 = vst [vmem:[%s427 + $0x98] sm:$0xff] %v511
        %542 = vst [vmem:[%s427 + $0xa0] sm:$0xff] %v512
        %543 = vst [vmem:[%s427 + $0xa8] sm:$0xff] %v513
        %544 = vst [vmem:[%s427 + $0xb0] sm:$0xff] %v514
        %545 = vst [vmem:[%s427 + $0xb8] sm:$0xff] %v515
        %546 = vst [vmem:[%s427 + $0xc0] sm:$0xff] %v516
        %547 = vst [vmem:[%s427 + $0xc8] sm:$0xff] %v517
        %548 = vst [vmem:[%s427 + $0xd0] sm:$0xff] %v518
        %549 = vst [vmem:[%s427 + $0xd8] sm:$0xff] %v519
        %550 = vst [vmem:[%s427 + $0xe0] sm:$0xff] %v520
        %551 = vst [vmem:[%s427 + $0xe8] sm:$0xff] %v521
        %s552 = scalar_lea.vmem %s225, 4 [#allocation7]
        %v553 = vld [vmem:[%s552] sm:$0x1]
        %v554 = vld [vmem:[#allocation3] sm:$0xff]
        %v555 = vld [vmem:[#allocation3 + $0x8] sm:$0xff]
        %v556 = vld [vmem:[#allocation3 + $0x10] sm:$0xff]
        %v557 = vld [vmem:[#allocation3 + $0x18] sm:$0xff]
        %v558 = vld [vmem:[#allocation3 + $0x20] sm:$0xff]
        %v559 = vld [vmem:[#allocation3 + $0x28] sm:$0xff]
        %v560 = vld [vmem:[#allocation3 + $0x30] sm:$0xff]
        %v561 = vld [vmem:[#allocation3 + $0x38] sm:$0xff]
        %v562 = vld [vmem:[#allocation3 + $0x40] sm:$0xff]
        %v563 = vld [vmem:[#allocation3 + $0x48] sm:$0xff]
        %v564 = vld [vmem:[#allocation3 + $0x50] sm:$0xff]
        %v565 = vld [vmem:[#allocation3 + $0x58] sm:$0xff]
        %v566 = vld [vmem:[#allocation3 + $0x60] sm:$0xff]
        %v567 = vld [vmem:[#allocation3 + $0x68] sm:$0xff]
        %v568 = vld [vmem:[#allocation3 + $0x70] sm:$0xff]
        %v569 = vld [vmem:[#allocation3 + $0x78] sm:$0xff]
        %v570 = vld [vmem:[#allocation3 + $0x80] sm:$0xff]
        %v571 = vld [vmem:[#allocation3 + $0x88] sm:$0xff]
        %v572 = vld [vmem:[#allocation3 + $0x90] sm:$0xff]
        %v573 = vld [vmem:[#allocation3 + $0x98] sm:$0xff]
        %v574 = vld [vmem:[#allocation3 + $0xa0] sm:$0xff]
        %v575 = vld [vmem:[#allocation3 + $0xa8] sm:$0xff]
        %v576 = vld [vmem:[#allocation3 + $0xb0] sm:$0xff]
        %v577 = vld [vmem:[#allocation3 + $0xb8] sm:$0xff]
        %v578 = vld [vmem:[#allocation3 + $0xc0] sm:$0xff]
        %v579 = vld [vmem:[#allocation3 + $0xc8] sm:$0xff]
        %v580 = vld [vmem:[#allocation3 + $0xd0] sm:$0xff]
        %v581 = vld [vmem:[#allocation3 + $0xd8] sm:$0xff]
        %v582 = vld [vmem:[#allocation3 + $0xe0] sm:$0xff]
        %v583 = vld [vmem:[#allocation3 + $0xe8] sm:$0xff]
        %v584 = vld [vmem:[#allocation3 + $0xf0] sm:$0xff]
        %v585 = vld [vmem:[#allocation3 + $0xf8] sm:$0xff]
        %v586 = vlaneseq
        %v587 = vshrl.u32 %v586, 7
        %v588 = vsub.s32 0, %v587
        %v589 = vrot.slane %v553, %v588
        %v590 = vmul.f32 %v394, %v589
        %v591 = vmul.f32 %v395, %v589
        %v592 = vmul.f32 %v396, %v589
        %v593 = vmul.f32 %v397, %v589
        %v594 = vmul.f32 %v398, %v589
        %v595 = vmul.f32 %v399, %v589
        %v596 = vmul.f32 %v400, %v589
        %v597 = vmul.f32 %v401, %v589
        %v598 = vmul.f32 %v402, %v589
        %v599 = vmul.f32 %v403, %v589
        %v600 = vmul.f32 %v404, %v589
        %v601 = vmul.f32 %v405, %v589
        %v602 = vmul.f32 %v406, %v589
        %v603 = vmul.f32 %v407, %v589
        %v604 = vmul.f32 %v408, %v589
        %v605 = vmul.f32 %v409, %v589
        %v606 = vmul.f32 %v410, %v589
        %v607 = vmul.f32 %v411, %v589
        %v608 = vmul.f32 %v412, %v589
        %v609 = vmul.f32 %v413, %v589
        %v610 = vmul.f32 %v414, %v589
        %v611 = vmul.f32 %v415, %v589
        %v612 = vmul.f32 %v416, %v589
        %v613 = vmul.f32 %v417, %v589
        %v614 = vmul.f32 %v418, %v589
        %v615 = vmul.f32 %v419, %v589
        %v616 = vmul.f32 %v420, %v589
        %v617 = vmul.f32 %v421, %v589
        %v618 = vmul.f32 %v422, %v589
        %v619 = vmul.f32 %v423, %v589
        %v620 = vmul.f32 %v424, %v589
        %v621 = vmul.f32 %v425, %v589
        %v622 = vadd.f32 %v554, %v590
        %v623 = vadd.f32 %v555, %v591
        %v624 = vadd.f32 %v556, %v592
        %v625 = vadd.f32 %v557, %v593
        %v626 = vadd.f32 %v558, %v594
        %v627 = vadd.f32 %v559, %v595
        %v628 = vadd.f32 %v560, %v596
        %v629 = vadd.f32 %v561, %v597
        %v630 = vadd.f32 %v562, %v598
        %v631 = vadd.f32 %v563, %v599
        %v632 = vadd.f32 %v564, %v600
        %v633 = vadd.f32 %v565, %v601
        %v634 = vadd.f32 %v566, %v602
        %v635 = vadd.f32 %v567, %v603
        %v636 = vadd.f32 %v568, %v604
        %v637 = vadd.f32 %v569, %v605
        %v638 = vadd.f32 %v570, %v606
        %v639 = vadd.f32 %v571, %v607
        %v640 = vadd.f32 %v572, %v608
        %v641 = vadd.f32 %v573, %v609
        %v642 = vadd.f32 %v574, %v610
        %v643 = vadd.f32 %v575, %v611
        %v644 = vadd.f32 %v576, %v612
        %v645 = vadd.f32 %v577, %v613
        %v646 = vadd.f32 %v578, %v614
        %v647 = vadd.f32 %v579, %v615
        %v648 = vadd.f32 %v580, %v616
        %v649 = vadd.f32 %v581, %v617
        %v650 = vadd.f32 %v582, %v618
        %v651 = vadd.f32 %v583, %v619
        %v652 = vadd.f32 %v584, %v620
        %v653 = vadd.f32 %v585, %v621
        %654 = vst [vmem:[#allocation3] sm:$0xff] %v622
        %655 = vst [vmem:[#allocation3 + $0x8] sm:$0xff] %v623
        %656 = vst [vmem:[#allocation3 + $0x10] sm:$0xff] %v624
        %657 = vst [vmem:[#allocation3 + $0x18] sm:$0xff] %v625
        %658 = vst [vmem:[#allocation3 + $0x20] sm:$0xff] %v626
        %659 = vst [vmem:[#allocation3 + $0x28] sm:$0xff] %v627
        %660 = vst [vmem:[#allocation3 + $0x30] sm:$0xff] %v628
        %661 = vst [vmem:[#allocation3 + $0x38] sm:$0xff] %v629
        %662 = vst [vmem:[#allocation3 + $0x40] sm:$0xff] %v630
        %663 = vst [vmem:[#allocation3 + $0x48] sm:$0xff] %v631
        %664 = vst [vmem:[#allocation3 + $0x50] sm:$0xff] %v632
        %665 = vst [vmem:[#allocation3 + $0x58] sm:$0xff] %v633
        %666 = vst [vmem:[#allocation3 + $0x60] sm:$0xff] %v634
        %667 = vst [vmem:[#allocation3 + $0x68] sm:$0xff] %v635
        %668 = vst [vmem:[#allocation3 + $0x70] sm:$0xff] %v636
        %669 = vst [vmem:[#allocation3 + $0x78] sm:$0xff] %v637
        %670 = vst [vmem:[#allocation3 + $0x80] sm:$0xff] %v638
        %671 = vst [vmem:[#allocation3 + $0x88] sm:$0xff] %v639
        %672 = vst [vmem:[#allocation3 + $0x90] sm:$0xff] %v640
        %673 = vst [vmem:[#allocation3 + $0x98] sm:$0xff] %v641
        %674 = vst [vmem:[#allocation3 + $0xa0] sm:$0xff] %v642
        %675 = vst [vmem:[#allocation3 + $0xa8] sm:$0xff] %v643
        %676 = vst [vmem:[#allocation3 + $0xb0] sm:$0xff] %v644
        %677 = vst [vmem:[#allocation3 + $0xb8] sm:$0xff] %v645
        %678 = vst [vmem:[#allocation3 + $0xc0] sm:$0xff] %v646
        %679 = vst [vmem:[#allocation3 + $0xc8] sm:$0xff] %v647
        %680 = vst [vmem:[#allocation3 + $0xd0] sm:$0xff] %v648
        %681 = vst [vmem:[#allocation3 + $0xd8] sm:$0xff] %v649
        %682 = vst [vmem:[#allocation3 + $0xe0] sm:$0xff] %v650
        %683 = vst [vmem:[#allocation3 + $0xe8] sm:$0xff] %v651
        %684 = vst [vmem:[#allocation3 + $0xf0] sm:$0xff] %v652
        %685 = vst [vmem:[#allocation3 + $0xf8] sm:$0xff] %v653
        %s686 = scalar_lea.vmem %s225, 8 [#allocation7]
        %v687 = vld [vmem:[%s686] sm:$0x1]
        %v688 = vld [vmem:[#allocation3] sm:$0xff]
        %v689 = vld [vmem:[#allocation3 + $0x8] sm:$0xff]
        %v690 = vld [vmem:[#allocation3 + $0x10] sm:$0xff]
        %v691 = vld [vmem:[#allocation3 + $0x18] sm:$0xff]
        %v692 = vld [vmem:[#allocation3 + $0x20] sm:$0xff]
        %v693 = vld [vmem:[#allocation3 + $0x28] sm:$0xff]
        %v694 = vld [vmem:[#allocation3 + $0x30] sm:$0xff]
        %v695 = vld [vmem:[#allocation3 + $0x38] sm:$0xff]
        %v696 = vld [vmem:[#allocation3 + $0x40] sm:$0xff]
        %v697 = vld [vmem:[#allocation3 + $0x48] sm:$0xff]
        %v698 = vld [vmem:[#allocation3 + $0x50] sm:$0xff]
        %v699 = vld [vmem:[#allocation3 + $0x58] sm:$0xff]
        %v700 = vld [vmem:[#allocation3 + $0x60] sm:$0xff]
        %v701 = vld [vmem:[#allocation3 + $0x68] sm:$0xff]
        %v702 = vld [vmem:[#allocation3 + $0x70] sm:$0xff]
        %v703 = vld [vmem:[#allocation3 + $0x78] sm:$0xff]
        %v704 = vld [vmem:[#allocation3 + $0x80] sm:$0xff]
        %v705 = vld [vmem:[#allocation3 + $0x88] sm:$0xff]
        %v706 = vld [vmem:[#allocation3 + $0x90] sm:$0xff]
        %v707 = vld [vmem:[#allocation3 + $0x98] sm:$0xff]
        %v708 = vld [vmem:[#allocation3 + $0xa0] sm:$0xff]
        %v709 = vld [vmem:[#allocation3 + $0xa8] sm:$0xff]
        %v710 = vld [vmem:[#allocation3 + $0xb0] sm:$0xff]
        %v711 = vld [vmem:[#allocation3 + $0xb8] sm:$0xff]
        %v712 = vld [vmem:[#allocation3 + $0xc0] sm:$0xff]
        %v713 = vld [vmem:[#allocation3 + $0xc8] sm:$0xff]
        %v714 = vld [vmem:[#allocation3 + $0xd0] sm:$0xff]
        %v715 = vld [vmem:[#allocation3 + $0xd8] sm:$0xff]
        %v716 = vld [vmem:[#allocation3 + $0xe0] sm:$0xff]
        %v717 = vld [vmem:[#allocation3 + $0xe8] sm:$0xff]
        %v718 = vlaneseq
        %v719 = vshrl.u32 %v718, 7
        %v720 = vsub.s32 0, %v719
        %v721 = vrot.slane %v687, %v720
        %v722 = vmul.f32 %v396, %v721
        %v723 = vmul.f32 %v397, %v721
        %v724 = vmul.f32 %v398, %v721
        %v725 = vmul.f32 %v399, %v721
        %v726 = vmul.f32 %v400, %v721
        %v727 = vmul.f32 %v401, %v721
        %v728 = vmul.f32 %v402, %v721
        %v729 = vmul.f32 %v403, %v721
        %v730 = vmul.f32 %v404, %v721
        %v731 = vmul.f32 %v405, %v721
        %v732 = vmul.f32 %v406, %v721
        %v733 = vmul.f32 %v407, %v721
        %v734 = vmul.f32 %v408, %v721
        %v735 = vmul.f32 %v409, %v721
        %v736 = vmul.f32 %v410, %v721
        %v737 = vmul.f32 %v411, %v721
        %v738 = vmul.f32 %v412, %v721
        %v739 = vmul.f32 %v413, %v721
        %v740 = vmul.f32 %v414, %v721
        %v741 = vmul.f32 %v415, %v721
        %v742 = vmul.f32 %v416, %v721
        %v743 = vmul.f32 %v417, %v721
        %v744 = vmul.f32 %v418, %v721
        %v745 = vmul.f32 %v419, %v721
        %v746 = vmul.f32 %v420, %v721
        %v747 = vmul.f32 %v421, %v721
        %v748 = vmul.f32 %v422, %v721
        %v749 = vmul.f32 %v423, %v721
        %v750 = vmul.f32 %v424, %v721
        %v751 = vmul.f32 %v425, %v721
        %v752 = vadd.f32 %v688, %v722
        %v753 = vadd.f32 %v689, %v723
        %v754 = vadd.f32 %v690, %v724
        %v755 = vadd.f32 %v691, %v725
        %v756 = vadd.f32 %v692, %v726
        %v757 = vadd.f32 %v693, %v727
        %v758 = vadd.f32 %v694, %v728
        %v759 = vadd.f32 %v695, %v729
        %v760 = vadd.f32 %v696, %v730
        %v761 = vadd.f32 %v697, %v731
        %v762 = vadd.f32 %v698, %v732
        %v763 = vadd.f32 %v699, %v733
        %v764 = vadd.f32 %v700, %v734
        %v765 = vadd.f32 %v701, %v735
        %v766 = vadd.f32 %v702, %v736
        %v767 = vadd.f32 %v703, %v737
        %v768 = vadd.f32 %v704, %v738
        %v769 = vadd.f32 %v705, %v739
        %v770 = vadd.f32 %v706, %v740
        %v771 = vadd.f32 %v707, %v741
        %v772 = vadd.f32 %v708, %v742
        %v773 = vadd.f32 %v709, %v743
        %v774 = vadd.f32 %v710, %v744
        %v775 = vadd.f32 %v711, %v745
        %v776 = vadd.f32 %v712, %v746
        %v777 = vadd.f32 %v713, %v747
        %v778 = vadd.f32 %v714, %v748
        %v779 = vadd.f32 %v715, %v749
        %v780 = vadd.f32 %v716, %v750
        %v781 = vadd.f32 %v717, %v751
        %782 = vst [vmem:[#allocation3] sm:$0xff] %v752
        %783 = vst [vmem:[#allocation3 + $0x8] sm:$0xff] %v753
        %784 = vst [vmem:[#allocation3 + $0x10] sm:$0xff] %v754
        %785 = vst [vmem:[#allocation3 + $0x18] sm:$0xff] %v755
        %786 = vst [vmem:[#allocation3 + $0x20] sm:$0xff] %v756
        %787 = vst [vmem:[#allocation3 + $0x28] sm:$0xff] %v757
        %788 = vst [vmem:[#allocation3 + $0x30] sm:$0xff] %v758
        %789 = vst [vmem:[#allocation3 + $0x38] sm:$0xff] %v759
        %790 = vst [vmem:[#allocation3 + $0x40] sm:$0xff] %v760
        %791 = vst [vmem:[#allocation3 + $0x48] sm:$0xff] %v761
        %792 = vst [vmem:[#allocation3 + $0x50] sm:$0xff] %v762
        %793 = vst [vmem:[#allocation3 + $0x58] sm:$0xff] %v763
        %794 = vst [vmem:[#allocation3 + $0x60] sm:$0xff] %v764
        %795 = vst [vmem:[#allocation3 + $0x68] sm:$0xff] %v765
        %796 = vst [vmem:[#allocation3 + $0x70] sm:$0xff] %v766
        %797 = vst [vmem:[#allocation3 + $0x78] sm:$0xff] %v767
        %798 = vst [vmem:[#allocation3 + $0x80] sm:$0xff] %v768
        %799 = vst [vmem:[#allocation3 + $0x88] sm:$0xff] %v769
        %800 = vst [vmem:[#allocation3 + $0x90] sm:$0xff] %v770
        %801 = vst [vmem:[#allocation3 + $0x98] sm:$0xff] %v771
        %802 = vst [vmem:[#allocation3 + $0xa0] sm:$0xff] %v772
        %803 = vst [vmem:[#allocation3 + $0xa8] sm:$0xff] %v773
        %804 = vst [vmem:[#allocation3 + $0xb0] sm:$0xff] %v774
        %805 = vst [vmem:[#allocation3 + $0xb8] sm:$0xff] %v775
        %806 = vst [vmem:[#allocation3 + $0xc0] sm:$0xff] %v776
        %807 = vst [vmem:[#allocation3 + $0xc8] sm:$0xff] %v777
        %808 = vst [vmem:[#allocation3 + $0xd0] sm:$0xff] %v778
        %809 = vst [vmem:[#allocation3 + $0xd8] sm:$0xff] %v779
        %810 = vst [vmem:[#allocation3 + $0xe0] sm:$0xff] %v780
        %811 = vst [vmem:[#allocation3 + $0xe8] sm:$0xff] %v781
        %v812 = vld [vmem:[#allocation2 + $0x8] sm:$0xff]
        %v813 = vld [vmem:[#allocation2 + $0x10] sm:$0xff]
        %v814 = vld [vmem:[#allocation2 + $0x28] sm:$0xff]
        %v815 = vld [vmem:[#allocation2 + $0x30] sm:$0xff]
        %v816 = vld [vmem:[#allocation2 + $0x48] sm:$0xff]
        %v817 = vld [vmem:[#allocation2 + $0x50] sm:$0xff]
        %v818 = vld [vmem:[#allocation2 + $0x68] sm:$0xff]
        %v819 = vld [vmem:[#allocation2 + $0x70] sm:$0xff]
        %v820 = vld [vmem:[#allocation2 + $0x88] sm:$0xff]
        %v821 = vld [vmem:[#allocation2 + $0x90] sm:$0xff]
        %v822 = vld [vmem:[#allocation2 + $0xa8] sm:$0xff]
        %v823 = vld [vmem:[#allocation2 + $0xb0] sm:$0xff]
        %v824 = vld [vmem:[#allocation2 + $0xc8] sm:$0xff]
        %v825 = vld [vmem:[#allocation2 + $0xd0] sm:$0xff]
        %v826 = vld [vmem:[#allocation2 + $0xe8] sm:$0xff]
        %v827 = vld [vmem:[#allocation2 + $0xf0] sm:$0xff]
        %v828 = vld [vmem:[#allocation2 + $0x108] sm:$0xff]
        %v829 = vld [vmem:[#allocation2 + $0x110] sm:$0xff]
        %v830 = vld [vmem:[#allocation2 + $0x128] sm:$0xff]
        %v831 = vld [vmem:[#allocation2 + $0x130] sm:$0xff]
        %v832 = vld [vmem:[#allocation2 + $0x148] sm:$0xff]
        %v833 = vld [vmem:[#allocation2 + $0x150] sm:$0xff]
        %v834 = vld [vmem:[#allocation2 + $0x168] sm:$0xff]
        %v835 = vld [vmem:[#allocation2 + $0x170] sm:$0xff]
        %v836 = vld [vmem:[#allocation2 + $0x188] sm:$0xff]
        %v837 = vld [vmem:[#allocation2 + $0x190] sm:$0xff]
        %v838 = vld [vmem:[#allocation2 + $0x1a8] sm:$0xff]
        %v839 = vld [vmem:[#allocation2 + $0x1b0] sm:$0xff]
        %v840 = vld [vmem:[#allocation2 + $0x1c8] sm:$0xff]
        %v841 = vld [vmem:[#allocation2 + $0x1d0] sm:$0xff]
        %v842 = vld [vmem:[#allocation2 + $0x1e8] sm:$0xff]
        %v843 = vld [vmem:[#allocation2 + $0x1f0] sm:$0xff]
        %v844 = vld [vmem:[%s225 + $0x1] sm:$0x1]
        %v845 = vld [vmem:[%s427] sm:$0xff]
        %v846 = vld [vmem:[%s427 + $0x8] sm:$0xff]
        %v847 = vld [vmem:[%s427 + $0x10] sm:$0xff]
        %v848 = vld [vmem:[%s427 + $0x18] sm:$0xff]
        %v849 = vld [vmem:[%s427 + $0x20] sm:$0xff]
        %v850 = vld [vmem:[%s427 + $0x28] sm:$0xff]
        %v851 = vld [vmem:[%s427 + $0x30] sm:$0xff]
        %v852 = vld [vmem:[%s427 + $0x38] sm:$0xff]
        %v853 = vld [vmem:[%s427 + $0x40] sm:$0xff]
        %v854 = vld [vmem:[%s427 + $0x48] sm:$0xff]
        %v855 = vld [vmem:[%s427 + $0x50] sm:$0xff]
        %v856 = vld [vmem:[%s427 + $0x58] sm:$0xff]
        %v857 = vld [vmem:[%s427 + $0x60] sm:$0xff]
        %v858 = vld [vmem:[%s427 + $0x68] sm:$0xff]
        %v859 = vld [vmem:[%s427 + $0x70] sm:$0xff]
        %v860 = vld [vmem:[%s427 + $0x78] sm:$0xff]
        %v861 = vld [vmem:[%s427 + $0x80] sm:$0xff]
        %v862 = vld [vmem:[%s427 + $0x88] sm:$0xff]
        %v863 = vld [vmem:[%s427 + $0x90] sm:$0xff]
        %v864 = vld [vmem:[%s427 + $0x98] sm:$0xff]
        %v865 = vld [vmem:[%s427 + $0xa0] sm:$0xff]
        %v866 = vld [vmem:[%s427 + $0xa8] sm:$0xff]
        %v867 = vld [vmem:[%s427 + $0xb0] sm:$0xff]
        %v868 = vld [vmem:[%s427 + $0xb8] sm:$0xff]
        %v869 = vld [vmem:[%s427 + $0xc0] sm:$0xff]
        %v870 = vld [vmem:[%s427 + $0xc8] sm:$0xff]
        %v871 = vld [vmem:[%s427 + $0xd0] sm:$0xff]
        %v872 = vld [vmem:[%s427 + $0xd8] sm:$0xff]
        %v873 = vld [vmem:[%s427 + $0xe0] sm:$0xff]
        %v874 = vld [vmem:[%s427 + $0xe8] sm:$0xff]
        %v875 = vlaneseq
        %v876 = vshrl.u32 %v875, 7
        %v877 = vsub.s32 0, %v876
        %v878 = vrot.slane %v844, %v877
        %v879 = vmul.f32 %v812, %v878
        %v880 = vmul.f32 %v813, %v878
        %v881 = vmul.f32 %v814, %v878
        %v882 = vmul.f32 %v815, %v878
        %v883 = vmul.f32 %v816, %v878
        %v884 = vmul.f32 %v817, %v878
        %v885 = vmul.f32 %v818, %v878
        %v886 = vmul.f32 %v819, %v878
        %v887 = vmul.f32 %v820, %v878
        %v888 = vmul.f32 %v821, %v878
        %v889 = vmul.f32 %v822, %v878
        %v890 = vmul.f32 %v823, %v878
        %v891 = vmul.f32 %v824, %v878
        %v892 = vmul.f32 %v825, %v878
        %v893 = vmul.f32 %v826, %v878
        %v894 = vmul.f32 %v827, %v878
        %v895 = vmul.f32 %v828, %v878
        %v896 = vmul.f32 %v829, %v878
        %v897 = vmul.f32 %v830, %v878
        %v898 = vmul.f32 %v831, %v878
        %v899 = vmul.f32 %v832, %v878
        %v900 = vmul.f32 %v833, %v878
        %v901 = vmul.f32 %v834, %v878
        %v902 = vmul.f32 %v835, %v878
        %v903 = vmul.f32 %v836, %v878
        %v904 = vmul.f32 %v837, %v878
        %v905 = vmul.f32 %v838, %v878
        %v906 = vmul.f32 %v839, %v878
        %v907 = vmul.f32 %v840, %v878
        %v908 = vmul.f32 %v841, %v878
        %v909 = vadd.f32 %v845, %v879
        %v910 = vadd.f32 %v846, %v880
        %v911 = vadd.f32 %v847, %v881
        %v912 = vadd.f32 %v848, %v882
        %v913 = vadd.f32 %v849, %v883
        %v914 = vadd.f32 %v850, %v884
        %v915 = vadd.f32 %v851, %v885
        %v916 = vadd.f32 %v852, %v886
        %v917 = vadd.f32 %v853, %v887
        %v918 = vadd.f32 %v854, %v888
        %v919 = vadd.f32 %v855, %v889
        %v920 = vadd.f32 %v856, %v890
        %v921 = vadd.f32 %v857, %v891
        %v922 = vadd.f32 %v858, %v892
        %v923 = vadd.f32 %v859, %v893
        %v924 = vadd.f32 %v860, %v894
        %v925 = vadd.f32 %v861, %v895
        %v926 = vadd.f32 %v862, %v896
        %v927 = vadd.f32 %v863, %v897
        %v928 = vadd.f32 %v864, %v898
        %v929 = vadd.f32 %v865, %v899
        %v930 = vadd.f32 %v866, %v900
        %v931 = vadd.f32 %v867, %v901
        %v932 = vadd.f32 %v868, %v902
        %v933 = vadd.f32 %v869, %v903
        %v934 = vadd.f32 %v870, %v904
        %v935 = vadd.f32 %v871, %v905
        %v936 = vadd.f32 %v872, %v906
        %v937 = vadd.f32 %v873, %v907
        %v938 = vadd.f32 %v874, %v908
        %939 = vst [vmem:[%s427] sm:$0xff] %v909
        %940 = vst [vmem:[%s427 + $0x8] sm:$0xff] %v910
        %941 = vst [vmem:[%s427 + $0x10] sm:$0xff] %v911
        %942 = vst [vmem:[%s427 + $0x18] sm:$0xff] %v912
        %943 = vst [vmem:[%s427 + $0x20] sm:$0xff] %v913
        %944 = vst [vmem:[%s427 + $0x28] sm:$0xff] %v914
        %945 = vst [vmem:[%s427 + $0x30] sm:$0xff] %v915
        %946 = vst [vmem:[%s427 + $0x38] sm:$0xff] %v916
        %947 = vst [vmem:[%s427 + $0x40] sm:$0xff] %v917
        %948 = vst [vmem:[%s427 + $0x48] sm:$0xff] %v918
        %949 = vst [vmem:[%s427 + $0x50] sm:$0xff] %v919
        %950 = vst [vmem:[%s427 + $0x58] sm:$0xff] %v920
        %951 = vst [vmem:[%s427 + $0x60] sm:$0xff] %v921
        %952 = vst [vmem:[%s427 + $0x68] sm:$0xff] %v922
        %953 = vst [vmem:[%s427 + $0x70] sm:$0xff] %v923
        %954 = vst [vmem:[%s427 + $0x78] sm:$0xff] %v924
        %955 = vst [vmem:[%s427 + $0x80] sm:$0xff] %v925
        %956 = vst [vmem:[%s427 + $0x88] sm:$0xff] %v926
        %957 = vst [vmem:[%s427 + $0x90] sm:$0xff] %v927
        %958 = vst [vmem:[%s427 + $0x98] sm:$0xff] %v928
        %959 = vst [vmem:[%s427 + $0xa0] sm:$0xff] %v929
        %960 = vst [vmem:[%s427 + $0xa8] sm:$0xff] %v930
        %961 = vst [vmem:[%s427 + $0xb0] sm:$0xff] %v931
        %962 = vst [vmem:[%s427 + $0xb8] sm:$0xff] %v932
        %963 = vst [vmem:[%s427 + $0xc0] sm:$0xff] %v933
        %964 = vst [vmem:[%s427 + $0xc8] sm:$0xff] %v934
        %965 = vst [vmem:[%s427 + $0xd0] sm:$0xff] %v935
        %966 = vst [vmem:[%s427 + $0xd8] sm:$0xff] %v936
        %967 = vst [vmem:[%s427 + $0xe0] sm:$0xff] %v937
        %968 = vst [vmem:[%s427 + $0xe8] sm:$0xff] %v938
        %v969 = vld [vmem:[%s552 + $0x1] sm:$0x1]
        %v970 = vld [vmem:[#allocation3] sm:$0xff]
        %v971 = vld [vmem:[#allocation3 + $0x8] sm:$0xff]
        %v972 = vld [vmem:[#allocation3 + $0x10] sm:$0xff]
        %v973 = vld [vmem:[#allocation3 + $0x18] sm:$0xff]
        %v974 = vld [vmem:[#allocation3 + $0x20] sm:$0xff]
        %v975 = vld [vmem:[#allocation3 + $0x28] sm:$0xff]
        %v976 = vld [vmem:[#allocation3 + $0x30] sm:$0xff]
        %v977 = vld [vmem:[#allocation3 + $0x38] sm:$0xff]
        %v978 = vld [vmem:[#allocation3 + $0x40] sm:$0xff]
        %v979 = vld [vmem:[#allocation3 + $0x48] sm:$0xff]
        %v980 = vld [vmem:[#allocation3 + $0x50] sm:$0xff]
        %v981 = vld [vmem:[#allocation3 + $0x58] sm:$0xff]
        %v982 = vld [vmem:[#allocation3 + $0x60] sm:$0xff]
        %v983 = vld [vmem:[#allocation3 + $0x68] sm:$0xff]
        %v984 = vld [vmem:[#allocation3 + $0x70] sm:$0xff]
        %v985 = vld [vmem:[#allocation3 + $0x78] sm:$0xff]
        %v986 = vld [vmem:[#allocation3 + $0x80] sm:$0xff]
        %v987 = vld [vmem:[#allocation3 + $0x88] sm:$0xff]
        %v988 = vld [vmem:[#allocation3 + $0x90] sm:$0xff]
        %v989 = vld [vmem:[#allocation3 + $0x98] sm:$0xff]
        %v990 = vld [vmem:[#allocation3 + $0xa0] sm:$0xff]
        %v991 = vld [vmem:[#allocation3 + $0xa8] sm:$0xff]
        %v992 = vld [vmem:[#allocation3 + $0xb0] sm:$0xff]
        %v993 = vld [vmem:[#allocation3 + $0xb8] sm:$0xff]
        %v994 = vld [vmem:[#allocation3 + $0xc0] sm:$0xff]
        %v995 = vld [vmem:[#allocation3 + $0xc8] sm:$0xff]
        %v996 = vld [vmem:[#allocation3 + $0xd0] sm:$0xff]
        %v997 = vld [vmem:[#allocation3 + $0xd8] sm:$0xff]
        %v998 = vld [vmem:[#allocation3 + $0xe0] sm:$0xff]
        %v999 = vld [vmem:[#allocation3 + $0xe8] sm:$0xff]
        %v1000 = vld [vmem:[#allocation3 + $0xf0] sm:$0xff]
        %v1001 = vld [vmem:[#allocation3 + $0xf8] sm:$0xff]
        %v1002 = vlaneseq
        %v1003 = vshrl.u32 %v1002, 7
        %v1004 = vsub.s32 0, %v1003
        %v1005 = vrot.slane %v969, %v1004
        %v1006 = vmul.f32 %v812, %v1005
        %v1007 = vmul.f32 %v813, %v1005
        %v1008 = vmul.f32 %v814, %v1005
        %v1009 = vmul.f32 %v815, %v1005
        %v1010 = vmul.f32 %v816, %v1005
        %v1011 = vmul.f32 %v817, %v1005
        %v1012 = vmul.f32 %v818, %v1005
        %v1013 = vmul.f32 %v819, %v1005
        %v1014 = vmul.f32 %v820, %v1005
        %v1015 = vmul.f32 %v821, %v1005
        %v1016 = vmul.f32 %v822, %v1005
        %v1017 = vmul.f32 %v823, %v1005
        %v1018 = vmul.f32 %v824, %v1005
        %v1019 = vmul.f32 %v825, %v1005
        %v1020 = vmul.f32 %v826, %v1005
        %v1021 = vmul.f32 %v827, %v1005
        %v1022 = vmul.f32 %v828, %v1005
        %v1023 = vmul.f32 %v829, %v1005
        %v1024 = vmul.f32 %v830, %v1005
        %v1025 = vmul.f32 %v831, %v1005
        %v1026 = vmul.f32 %v832, %v1005
        %v1027 = vmul.f32 %v833, %v1005
        %v1028 = vmul.f32 %v834, %v1005
        %v1029 = vmul.f32 %v835, %v1005
        %v1030 = vmul.f32 %v836, %v1005
        %v1031 = vmul.f32 %v837, %v1005
        %v1032 = vmul.f32 %v838, %v1005
        %v1033 = vmul.f32 %v839, %v1005
        %v1034 = vmul.f32 %v840, %v1005
        %v1035 = vmul.f32 %v841, %v1005
        %v1036 = vmul.f32 %v842, %v1005
        %v1037 = vmul.f32 %v843, %v1005
        %v1038 = vadd.f32 %v970, %v1006
        %v1039 = vadd.f32 %v971, %v1007
        %v1040 = vadd.f32 %v972, %v1008
        %v1041 = vadd.f32 %v973, %v1009
        %v1042 = vadd.f32 %v974, %v1010
        %v1043 = vadd.f32 %v975, %v1011
        %v1044 = vadd.f32 %v976, %v1012
        %v1045 = vadd.f32 %v977, %v1013
        %v1046 = vadd.f32 %v978, %v1014
        %v1047 = vadd.f32 %v979, %v1015
        %v1048 = vadd.f32 %v980, %v1016
        %v1049 = vadd.f32 %v981, %v1017
        %v1050 = vadd.f32 %v982, %v1018
        %v1051 = vadd.f32 %v983, %v1019
        %v1052 = vadd.f32 %v984, %v1020
        %v1053 = vadd.f32 %v985, %v1021
        %v1054 = vadd.f32 %v986, %v1022
        %v1055 = vadd.f32 %v987, %v1023
        %v1056 = vadd.f32 %v988, %v1024
        %v1057 = vadd.f32 %v989, %v1025
        %v1058 = vadd.f32 %v990, %v1026
        %v1059 = vadd.f32 %v991, %v1027
        %v1060 = vadd.f32 %v992, %v1028
        %v1061 = vadd.f32 %v993, %v1029
        %v1062 = vadd.f32 %v994, %v1030
        %v1063 = vadd.f32 %v995, %v1031
        %v1064 = vadd.f32 %v996, %v1032
        %v1065 = vadd.f32 %v997, %v1033
        %v1066 = vadd.f32 %v998, %v1034
        %v1067 = vadd.f32 %v999, %v1035
        %v1068 = vadd.f32 %v1000, %v1036
        %v1069 = vadd.f32 %v1001, %v1037
        %1070 = vst [vmem:[#allocation3] sm:$0xff] %v1038
        %1071 = vst [vmem:[#allocation3 + $0x8] sm:$0xff] %v1039
        %1072 = vst [vmem:[#allocation3 + $0x10] sm:$0xff] %v1040
        %1073 = vst [vmem:[#allocation3 + $0x18] sm:$0xff] %v1041
        %1074 = vst [vmem:[#allocation3 + $0x20] sm:$0xff] %v1042
        %1075 = vst [vmem:[#allocation3 + $0x28] sm:$0xff] %v1043
        %1076 = vst [vmem:[#allocation3 + $0x30] sm:$0xff] %v1044
        %1077 = vst [vmem:[#allocation3 + $0x38] sm:$0xff] %v1045
        %1078 = vst [vmem:[#allocation3 + $0x40] sm:$0xff] %v1046
        %1079 = vst [vmem:[#allocation3 + $0x48] sm:$0xff] %v1047
        %1080 = vst [vmem:[#allocation3 + $0x50] sm:$0xff] %v1048
        %1081 = vst [vmem:[#allocation3 + $0x58] sm:$0xff] %v1049
        %1082 = vst [vmem:[#allocation3 + $0x60] sm:$0xff] %v1050
        %1083 = vst [vmem:[#allocation3 + $0x68] sm:$0xff] %v1051
        %1084 = vst [vmem:[#allocation3 + $0x70] sm:$0xff] %v1052
        %1085 = vst [vmem:[#allocation3 + $0x78] sm:$0xff] %v1053
        %1086 = vst [vmem:[#allocation3 + $0x80] sm:$0xff] %v1054
        %1087 = vst [vmem:[#allocation3 + $0x88] sm:$0xff] %v1055
        %1088 = vst [vmem:[#allocation3 + $0x90] sm:$0xff] %v1056
        %1089 = vst [vmem:[#allocation3 + $0x98] sm:$0xff] %v1057
        %1090 = vst [vmem:[#allocation3 + $0xa0] sm:$0xff] %v1058
        %1091 = vst [vmem:[#allocation3 + $0xa8] sm:$0xff] %v1059
        %1092 = vst [vmem:[#allocation3 + $0xb0] sm:$0xff] %v1060
        %1093 = vst [vmem:[#allocation3 + $0xb8] sm:$0xff] %v1061
        %1094 = vst [vmem:[#allocation3 + $0xc0] sm:$0xff] %v1062
        %1095 = vst [vmem:[#allocation3 + $0xc8] sm:$0xff] %v1063
        %1096 = vst [vmem:[#allocation3 + $0xd0] sm:$0xff] %v1064
        %1097 = vst [vmem:[#allocation3 + $0xd8] sm:$0xff] %v1065
        %1098 = vst [vmem:[#allocation3 + $0xe0] sm:$0xff] %v1066
        %1099 = vst [vmem:[#allocation3 + $0xe8] sm:$0xff] %v1067
        %1100 = vst [vmem:[#allocation3 + $0xf0] sm:$0xff] %v1068
        %1101 = vst [vmem:[#allocation3 + $0xf8] sm:$0xff] %v1069
        %v1102 = vld [vmem:[%s686 + $0x1] sm:$0x1]
        %v1103 = vld [vmem:[#allocation3] sm:$0xff]
        %v1104 = vld [vmem:[#allocation3 + $0x8] sm:$0xff]
        %v1105 = vld [vmem:[#allocation3 + $0x10] sm:$0xff]
        %v1106 = vld [vmem:[#allocation3 + $0x18] sm:$0xff]
        %v1107 = vld [vmem:[#allocation3 + $0x20] sm:$0xff]
        %v1108 = vld [vmem:[#allocation3 + $0x28] sm:$0xff]
        %v1109 = vld [vmem:[#allocation3 + $0x30] sm:$0xff]
        %v1110 = vld [vmem:[#allocation3 + $0x38] sm:$0xff]
        %v1111 = vld [vmem:[#allocation3 + $0x40] sm:$0xff]
        %v1112 = vld [vmem:[#allocation3 + $0x48] sm:$0xff]
        %v1113 = vld [vmem:[#allocation3 + $0x50] sm:$0xff]
        %v1114 = vld [vmem:[#allocation3 + $0x58] sm:$0xff]
        %v1115 = vld [vmem:[#allocation3 + $0x60] sm:$0xff]
        %v1116 = vld [vmem:[#allocation3 + $0x68] sm:$0xff]
        %v1117 = vld [vmem:[#allocation3 + $0x70] sm:$0xff]
        %v1118 = vld [vmem:[#allocation3 + $0x78] sm:$0xff]
        %v1119 = vld [vmem:[#allocation3 + $0x80] sm:$0xff]
        %v1120 = vld [vmem:[#allocation3 + $0x88] sm:$0xff]
        %v1121 = vld [vmem:[#allocation3 + $0x90] sm:$0xff]
        %v1122 = vld [vmem:[#allocation3 + $0x98] sm:$0xff]
        %v1123 = vld [vmem:[#allocation3 + $0xa0] sm:$0xff]
        %v1124 = vld [vmem:[#allocation3 + $0xa8] sm:$0xff]
        %v1125 = vld [vmem:[#allocation3 + $0xb0] sm:$0xff]
        %v1126 = vld [vmem:[#allocation3 + $0xb8] sm:$0xff]
        %v1127 = vld [vmem:[#allocation3 + $0xc0] sm:$0xff]
        %v1128 = vld [vmem:[#allocation3 + $0xc8] sm:$0xff]
        %v1129 = vld [vmem:[#allocation3 + $0xd0] sm:$0xff]
        %v1130 = vld [vmem:[#allocation3 + $0xd8] sm:$0xff]
        %v1131 = vld [vmem:[#allocation3 + $0xe0] sm:$0xff]
        %v1132 = vld [vmem:[#allocation3 + $0xe8] sm:$0xff]
        %v1133 = vlaneseq
        %v1134 = vshrl.u32 %v1133, 7
        %v1135 = vsub.s32 0, %v1134
        %v1136 = vrot.slane %v1102, %v1135
        %v1137 = vmul.f32 %v814, %v1136
        %v1138 = vmul.f32 %v815, %v1136
        %v1139 = vmul.f32 %v816, %v1136
        %v1140 = vmul.f32 %v817, %v1136
        %v1141 = vmul.f32 %v818, %v1136
        %v1142 = vmul.f32 %v819, %v1136
        %v1143 = vmul.f32 %v820, %v1136
        %v1144 = vmul.f32 %v821, %v1136
        %v1145 = vmul.f32 %v822, %v1136
        %v1146 = vmul.f32 %v823, %v1136
        %v1147 = vmul.f32 %v824, %v1136
        %v1148 = vmul.f32 %v825, %v1136
        %v1149 = vmul.f32 %v826, %v1136
        %v1150 = vmul.f32 %v827, %v1136
        %v1151 = vmul.f32 %v828, %v1136
        %v1152 = vmul.f32 %v829, %v1136
        %v1153 = vmul.f32 %v830, %v1136
        %v1154 = vmul.f32 %v831, %v1136
        %v1155 = vmul.f32 %v832, %v1136
        %v1156 = vmul.f32 %v833, %v1136
        %v1157 = vmul.f32 %v834, %v1136
        %v1158 = vmul.f32 %v835, %v1136
        %v1159 = vmul.f32 %v836, %v1136
        %v1160 = vmul.f32 %v837, %v1136
        %v1161 = vmul.f32 %v838, %v1136
        %v1162 = vmul.f32 %v839, %v1136
        %v1163 = vmul.f32 %v840, %v1136
        %v1164 = vmul.f32 %v841, %v1136
        %v1165 = vmul.f32 %v842, %v1136
        %v1166 = vmul.f32 %v843, %v1136
        %v1167 = vadd.f32 %v1103, %v1137
        %v1168 = vadd.f32 %v1104, %v1138
        %v1169 = vadd.f32 %v1105, %v1139
        %v1170 = vadd.f32 %v1106, %v1140
        %v1171 = vadd.f32 %v1107, %v1141
        %v1172 = vadd.f32 %v1108, %v1142
        %v1173 = vadd.f32 %v1109, %v1143
        %v1174 = vadd.f32 %v1110, %v1144
        %v1175 = vadd.f32 %v1111, %v1145
        %v1176 = vadd.f32 %v1112, %v1146
        %v1177 = vadd.f32 %v1113, %v1147
        %v1178 = vadd.f32 %v1114, %v1148
        %v1179 = vadd.f32 %v1115, %v1149
        %v1180 = vadd.f32 %v1116, %v1150
        %v1181 = vadd.f32 %v1117, %v1151
        %v1182 = vadd.f32 %v1118, %v1152
        %v1183 = vadd.f32 %v1119, %v1153
        %v1184 = vadd.f32 %v1120, %v1154
        %v1185 = vadd.f32 %v1121, %v1155
        %v1186 = vadd.f32 %v1122, %v1156
        %v1187 = vadd.f32 %v1123, %v1157
        %v1188 = vadd.f32 %v1124, %v1158
        %v1189 = vadd.f32 %v1125, %v1159
        %v1190 = vadd.f32 %v1126, %v1160
        %v1191 = vadd.f32 %v1127, %v1161
        %v1192 = vadd.f32 %v1128, %v1162
        %v1193 = vadd.f32 %v1129, %v1163
        %v1194 = vadd.f32 %v1130, %v1164
        %v1195 = vadd.f32 %v1131, %v1165
        %v1196 = vadd.f32 %v1132, %v1166
        %1197 = vst [vmem:[#allocation3] sm:$0xff] %v1167
        %1198 = vst [vmem:[#allocation3 + $0x8] sm:$0xff] %v1168
        %1199 = vst [vmem:[#allocation3 + $0x10] sm:$0xff] %v1169
        %1200 = vst [vmem:[#allocation3 + $0x18] sm:$0xff] %v1170
        %1201 = vst [vmem:[#allocation3 + $0x20] sm:$0xff] %v1171
        %1202 = vst [vmem:[#allocation3 + $0x28] sm:$0xff] %v1172
        %1203 = vst [vmem:[#allocation3 + $0x30] sm:$0xff] %v1173
        %1204 = vst [vmem:[#allocation3 + $0x38] sm:$0xff] %v1174
        %1205 = vst [vmem:[#allocation3 + $0x40] sm:$0xff] %v1175
        %1206 = vst [vmem:[#allocation3 + $0x48] sm:$0xff] %v1176
        %1207 = vst [vmem:[#allocation3 + $0x50] sm:$0xff] %v1177
        %1208 = vst [vmem:[#allocation3 + $0x58] sm:$0xff] %v1178
        %1209 = vst [vmem:[#allocation3 + $0x60] sm:$0xff] %v1179
        %1210 = vst [vmem:[#allocation3 + $0x68] sm:$0xff] %v1180
        %1211 = vst [vmem:[#allocation3 + $0x70] sm:$0xff] %v1181
        %1212 = vst [vmem:[#allocation3 + $0x78] sm:$0xff] %v1182
        %1213 = vst [vmem:[#allocation3 + $0x80] sm:$0xff] %v1183
        %1214 = vst [vmem:[#allocation3 + $0x88] sm:$0xff] %v1184
        %1215 = vst [vmem:[#allocation3 + $0x90] sm:$0xff] %v1185
        %1216 = vst [vmem:[#allocation3 + $0x98] sm:$0xff] %v1186
        %1217 = vst [vmem:[#allocation3 + $0xa0] sm:$0xff] %v1187
        %1218 = vst [vmem:[#allocation3 + $0xa8] sm:$0xff] %v1188
        %1219 = vst [vmem:[#allocation3 + $0xb0] sm:$0xff] %v1189
        %1220 = vst [vmem:[#allocation3 + $0xb8] sm:$0xff] %v1190
        %1221 = vst [vmem:[#allocation3 + $0xc0] sm:$0xff] %v1191
        %1222 = vst [vmem:[#allocation3 + $0xc8] sm:$0xff] %v1192
        %1223 = vst [vmem:[#allocation3 + $0xd0] sm:$0xff] %v1193
        %1224 = vst [vmem:[#allocation3 + $0xd8] sm:$0xff] %v1194
        %1225 = vst [vmem:[#allocation3 + $0xe0] sm:$0xff] %v1195
        %1226 = vst [vmem:[#allocation3 + $0xe8] sm:$0xff] %v1196
        %v1227 = vld [vmem:[#allocation2 + $0x9] sm:$0xff]
        %v1228 = vld [vmem:[#allocation2 + $0x11] sm:$0xff]
        %v1229 = vld [vmem:[#allocation2 + $0x29] sm:$0xff]
        %v1230 = vld [vmem:[#allocation2 + $0x31] sm:$0xff]
        %v1231 = vld [vmem:[#allocation2 + $0x49] sm:$0xff]
        %v1232 = vld [vmem:[#allocation2 + $0x51] sm:$0xff]
        %v1233 = vld [vmem:[#allocation2 + $0x69] sm:$0xff]
        %v1234 = vld [vmem:[#allocation2 + $0x71] sm:$0xff]
        %v1235 = vld [vmem:[#allocation2 + $0x89] sm:$0xff]
        %v1236 = vld [vmem:[#allocation2 + $0x91] sm:$0xff]
        %v1237 = vld [vmem:[#allocation2 + $0xa9] sm:$0xff]
        %v1238 = vld [vmem:[#allocation2 + $0xb1] sm:$0xff]
        %v1239 = vld [vmem:[#allocation2 + $0xc9] sm:$0xff]
        %v1240 = vld [vmem:[#allocation2 + $0xd1] sm:$0xff]
        %v1241 = vld [vmem:[#allocation2 + $0xe9] sm:$0xff]
        %v1242 = vld [vmem:[#allocation2 + $0xf1] sm:$0xff]
        %v1243 = vld [vmem:[#allocation2 + $0x109] sm:$0xff]
        %v1244 = vld [vmem:[#allocation2 + $0x111] sm:$0xff]
        %v1245 = vld [vmem:[#allocation2 + $0x129] sm:$0xff]
        %v1246 = vld [vmem:[#allocation2 + $0x131] sm:$0xff]
        %v1247 = vld [vmem:[#allocation2 + $0x149] sm:$0xff]
        %v1248 = vld [vmem:[#allocation2 + $0x151] sm:$0xff]
        %v1249 = vld [vmem:[#allocation2 + $0x169] sm:$0xff]
        %v1250 = vld [vmem:[#allocation2 + $0x171] sm:$0xff]
        %v1251 = vld [vmem:[#allocation2 + $0x189] sm:$0xff]
        %v1252 = vld [vmem:[#allocation2 + $0x191] sm:$0xff]
        %v1253 = vld [vmem:[#allocation2 + $0x1a9] sm:$0xff]
        %v1254 = vld [vmem:[#allocation2 + $0x1b1] sm:$0xff]
        %v1255 = vld [vmem:[#allocation2 + $0x1c9] sm:$0xff]
        %v1256 = vld [vmem:[#allocation2 + $0x1d1] sm:$0xff]
        %v1257 = vld [vmem:[#allocation2 + $0x1e9] sm:$0xff]
        %v1258 = vld [vmem:[#allocation2 + $0x1f1] sm:$0xff]
        %v1259 = vld [vmem:[%s225 + $0x2] sm:$0x1]
        %v1260 = vld [vmem:[%s427] sm:$0xff]
        %v1261 = vld [vmem:[%s427 + $0x8] sm:$0xff]
        %v1262 = vld [vmem:[%s427 + $0x10] sm:$0xff]
        %v1263 = vld [vmem:[%s427 + $0x18] sm:$0xff]
        %v1264 = vld [vmem:[%s427 + $0x20] sm:$0xff]
        %v1265 = vld [vmem:[%s427 + $0x28] sm:$0xff]
        %v1266 = vld [vmem:[%s427 + $0x30] sm:$0xff]
        %v1267 = vld [vmem:[%s427 + $0x38] sm:$0xff]
        %v1268 = vld [vmem:[%s427 + $0x40] sm:$0xff]
        %v1269 = vld [vmem:[%s427 + $0x48] sm:$0xff]
        %v1270 = vld [vmem:[%s427 + $0x50] sm:$0xff]
        %v1271 = vld [vmem:[%s427 + $0x58] sm:$0xff]
        %v1272 = vld [vmem:[%s427 + $0x60] sm:$0xff]
        %v1273 = vld [vmem:[%s427 + $0x68] sm:$0xff]
        %v1274 = vld [vmem:[%s427 + $0x70] sm:$0xff]
        %v1275 = vld [vmem:[%s427 + $0x78] sm:$0xff]
        %v1276 = vld [vmem:[%s427 + $0x80] sm:$0xff]
        %v1277 = vld [vmem:[%s427 + $0x88] sm:$0xff]
        %v1278 = vld [vmem:[%s427 + $0x90] sm:$0xff]
        %v1279 = vld [vmem:[%s427 + $0x98] sm:$0xff]
        %v1280 = vld [vmem:[%s427 + $0xa0] sm:$0xff]
        %v1281 = vld [vmem:[%s427 + $0xa8] sm:$0xff]
        %v1282 = vld [vmem:[%s427 + $0xb0] sm:$0xff]
        %v1283 = vld [vmem:[%s427 + $0xb8] sm:$0xff]
        %v1284 = vld [vmem:[%s427 + $0xc0] sm:$0xff]
        %v1285 = vld [vmem:[%s427 + $0xc8] sm:$0xff]
        %v1286 = vld [vmem:[%s427 + $0xd0] sm:$0xff]
        %v1287 = vld [vmem:[%s427 + $0xd8] sm:$0xff]
        %v1288 = vld [vmem:[%s427 + $0xe0] sm:$0xff]
        %v1289 = vld [vmem:[%s427 + $0xe8] sm:$0xff]
        %v1290 = vlaneseq
        %v1291 = vshrl.u32 %v1290, 7
        %v1292 = vsub.s32 0, %v1291
        %v1293 = vrot.slane %v1259, %v1292
        %v1294 = vmul.f32 %v1227, %v1293
        %v1295 = vmul.f32 %v1228, %v1293
        %v1296 = vmul.f32 %v1229, %v1293
        %v1297 = vmul.f32 %v1230, %v1293
        %v1298 = vmul.f32 %v1231, %v1293
        %v1299 = vmul.f32 %v1232, %v1293
        %v1300 = vmul.f32 %v1233, %v1293
        %v1301 = vmul.f32 %v1234, %v1293
        %v1302 = vmul.f32 %v1235, %v1293
        %v1303 = vmul.f32 %v1236, %v1293
        %v1304 = vmul.f32 %v1237, %v1293
        %v1305 = vmul.f32 %v1238, %v1293
        %v1306 = vmul.f32 %v1239, %v1293
        %v1307 = vmul.f32 %v1240, %v1293
        %v1308 = vmul.f32 %v1241, %v1293
        %v1309 = vmul.f32 %v1242, %v1293
        %v1310 = vmul.f32 %v1243, %v1293
        %v1311 = vmul.f32 %v1244, %v1293
        %v1312 = vmul.f32 %v1245, %v1293
        %v1313 = vmul.f32 %v1246, %v1293
        %v1314 = vmul.f32 %v1247, %v1293
        %v1315 = vmul.f32 %v1248, %v1293
        %v1316 = vmul.f32 %v1249, %v1293
        %v1317 = vmul.f32 %v1250, %v1293
        %v1318 = vmul.f32 %v1251, %v1293
        %v1319 = vmul.f32 %v1252, %v1293
        %v1320 = vmul.f32 %v1253, %v1293
        %v1321 = vmul.f32 %v1254, %v1293
        %v1322 = vmul.f32 %v1255, %v1293
        %v1323 = vmul.f32 %v1256, %v1293
        %v1324 = vadd.f32 %v1260, %v1294
        %v1325 = vadd.f32 %v1261, %v1295
        %v1326 = vadd.f32 %v1262, %v1296
        %v1327 = vadd.f32 %v1263, %v1297
        %v1328 = vadd.f32 %v1264, %v1298
        %v1329 = vadd.f32 %v1265, %v1299
        %v1330 = vadd.f32 %v1266, %v1300
        %v1331 = vadd.f32 %v1267, %v1301
        %v1332 = vadd.f32 %v1268, %v1302
        %v1333 = vadd.f32 %v1269, %v1303
        %v1334 = vadd.f32 %v1270, %v1304
        %v1335 = vadd.f32 %v1271, %v1305
        %v1336 = vadd.f32 %v1272, %v1306
        %v1337 = vadd.f32 %v1273, %v1307
        %v1338 = vadd.f32 %v1274, %v1308
        %v1339 = vadd.f32 %v1275, %v1309
        %v1340 = vadd.f32 %v1276, %v1310
        %v1341 = vadd.f32 %v1277, %v1311
        %v1342 = vadd.f32 %v1278, %v1312
        %v1343 = vadd.f32 %v1279, %v1313
        %v1344 = vadd.f32 %v1280, %v1314
        %v1345 = vadd.f32 %v1281, %v1315
        %v1346 = vadd.f32 %v1282, %v1316
        %v1347 = vadd.f32 %v1283, %v1317
        %v1348 = vadd.f32 %v1284, %v1318
        %v1349 = vadd.f32 %v1285, %v1319
        %v1350 = vadd.f32 %v1286, %v1320
        %v1351 = vadd.f32 %v1287, %v1321
        %v1352 = vadd.f32 %v1288, %v1322
        %v1353 = vadd.f32 %v1289, %v1323
        %1354 = vst [vmem:[%s427] sm:$0xff] %v1324
        %1355 = vst [vmem:[%s427 + $0x8] sm:$0xff] %v1325
        %1356 = vst [vmem:[%s427 + $0x10] sm:$0xff] %v1326
        %1357 = vst [vmem:[%s427 + $0x18] sm:$0xff] %v1327
        %1358 = vst [vmem:[%s427 + $0x20] sm:$0xff] %v1328
        %1359 = vst [vmem:[%s427 + $0x28] sm:$0xff] %v1329
        %1360 = vst [vmem:[%s427 + $0x30] sm:$0xff] %v1330
        %1361 = vst [vmem:[%s427 + $0x38] sm:$0xff] %v1331
        %1362 = vst [vmem:[%s427 + $0x40] sm:$0xff] %v1332
        %1363 = vst [vmem:[%s427 + $0x48] sm:$0xff] %v1333
        %1364 = vst [vmem:[%s427 + $0x50] sm:$0xff] %v1334
        %1365 = vst [vmem:[%s427 + $0x58] sm:$0xff] %v1335
        %1366 = vst [vmem:[%s427 + $0x60] sm:$0xff] %v1336
        %1367 = vst [vmem:[%s427 + $0x68] sm:$0xff] %v1337
        %1368 = vst [vmem:[%s427 + $0x70] sm:$0xff] %v1338
        %1369 = vst [vmem:[%s427 + $0x78] sm:$0xff] %v1339
        %1370 = vst [vmem:[%s427 + $0x80] sm:$0xff] %v1340
        %1371 = vst [vmem:[%s427 + $0x88] sm:$0xff] %v1341
        %1372 = vst [vmem:[%s427 + $0x90] sm:$0xff] %v1342
        %1373 = vst [vmem:[%s427 + $0x98] sm:$0xff] %v1343
        %1374 = vst [vmem:[%s427 + $0xa0] sm:$0xff] %v1344
        %1375 = vst [vmem:[%s427 + $0xa8] sm:$0xff] %v1345
        %1376 = vst [vmem:[%s427 + $0xb0] sm:$0xff] %v1346
        %1377 = vst [vmem:[%s427 + $0xb8] sm:$0xff] %v1347
        %1378 = vst [vmem:[%s427 + $0xc0] sm:$0xff] %v1348
        %1379 = vst [vmem:[%s427 + $0xc8] sm:$0xff] %v1349
        %1380 = vst [vmem:[%s427 + $0xd0] sm:$0xff] %v1350
        %1381 = vst [vmem:[%s427 + $0xd8] sm:$0xff] %v1351
        %1382 = vst [vmem:[%s427 + $0xe0] sm:$0xff] %v1352
        %1383 = vst [vmem:[%s427 + $0xe8] sm:$0xff] %v1353
        %v1384 = vld [vmem:[%s552 + $0x2] sm:$0x1]
        %v1385 = vld [vmem:[#allocation3] sm:$0xff]
        %v1386 = vld [vmem:[#allocation3 + $0x8] sm:$0xff]
        %v1387 = vld [vmem:[#allocation3 + $0x10] sm:$0xff]
        %v1388 = vld [vmem:[#allocation3 + $0x18] sm:$0xff]
        %v1389 = vld [vmem:[#allocation3 + $0x20] sm:$0xff]
        %v1390 = vld [vmem:[#allocation3 + $0x28] sm:$0xff]
        %v1391 = vld [vmem:[#allocation3 + $0x30] sm:$0xff]
        %v1392 = vld [vmem:[#allocation3 + $0x38] sm:$0xff]
        %v1393 = vld [vmem:[#allocation3 + $0x40] sm:$0xff]
        %v1394 = vld [vmem:[#allocation3 + $0x48] sm:$0xff]
        %v1395 = vld [vmem:[#allocation3 + $0x50] sm:$0xff]
        %v1396 = vld [vmem:[#allocation3 + $0x58] sm:$0xff]
        %v1397 = vld [vmem:[#allocation3 + $0x60] sm:$0xff]
        %v1398 = vld [vmem:[#allocation3 + $0x68] sm:$0xff]
        %v1399 = vld [vmem:[#allocation3 + $0x70] sm:$0xff]
        %v1400 = vld [vmem:[#allocation3 + $0x78] sm:$0xff]
        %v1401 = vld [vmem:[#allocation3 + $0x80] sm:$0xff]
        %v1402 = vld [vmem:[#allocation3 + $0x88] sm:$0xff]
        %v1403 = vld [vmem:[#allocation3 + $0x90] sm:$0xff]
        %v1404 = vld [vmem:[#allocation3 + $0x98] sm:$0xff]
        %v1405 = vld [vmem:[#allocation3 + $0xa0] sm:$0xff]
        %v1406 = vld [vmem:[#allocation3 + $0xa8] sm:$0xff]
        %v1407 = vld [vmem:[#allocation3 + $0xb0] sm:$0xff]
        %v1408 = vld [vmem:[#allocation3 + $0xb8] sm:$0xff]
        %v1409 = vld [vmem:[#allocation3 + $0xc0] sm:$0xff]
        %v1410 = vld [vmem:[#allocation3 + $0xc8] sm:$0xff]
        %v1411 = vld [vmem:[#allocation3 + $0xd0] sm:$0xff]
        %v1412 = vld [vmem:[#allocation3 + $0xd8] sm:$0xff]
        %v1413 = vld [vmem:[#allocation3 + $0xe0] sm:$0xff]
        %v1414 = vld [vmem:[#allocation3 + $0xe8] sm:$0xff]
        %v1415 = vld [vmem:[#allocation3 + $0xf0] sm:$0xff]
        %v1416 = vld [vmem:[#allocation3 + $0xf8] sm:$0xff]
        %v1417 = vlaneseq
        %v1418 = vshrl.u32 %v1417, 7
        %v1419 = vsub.s32 0, %v1418
        %v1420 = vrot.slane %v1384, %v1419
        %v1421 = vmul.f32 %v1227, %v1420
        %v1422 = vmul.f32 %v1228, %v1420
        %v1423 = vmul.f32 %v1229, %v1420
        %v1424 = vmul.f32 %v1230, %v1420
        %v1425 = vmul.f32 %v1231, %v1420
        %v1426 = vmul.f32 %v1232, %v1420
        %v1427 = vmul.f32 %v1233, %v1420
        %v1428 = vmul.f32 %v1234, %v1420
        %v1429 = vmul.f32 %v1235, %v1420
        %v1430 = vmul.f32 %v1236, %v1420
        %v1431 = vmul.f32 %v1237, %v1420
        %v1432 = vmul.f32 %v1238, %v1420
        %v1433 = vmul.f32 %v1239, %v1420
        %v1434 = vmul.f32 %v1240, %v1420
        %v1435 = vmul.f32 %v1241, %v1420
        %v1436 = vmul.f32 %v1242, %v1420
        %v1437 = vmul.f32 %v1243, %v1420
        %v1438 = vmul.f32 %v1244, %v1420
        %v1439 = vmul.f32 %v1245, %v1420
        %v1440 = vmul.f32 %v1246, %v1420
        %v1441 = vmul.f32 %v1247, %v1420
        %v1442 = vmul.f32 %v1248, %v1420
        %v1443 = vmul.f32 %v1249, %v1420
        %v1444 = vmul.f32 %v1250, %v1420
        %v1445 = vmul.f32 %v1251, %v1420
        %v1446 = vmul.f32 %v1252, %v1420
        %v1447 = vmul.f32 %v1253, %v1420
        %v1448 = vmul.f32 %v1254, %v1420
        %v1449 = vmul.f32 %v1255, %v1420
        %v1450 = vmul.f32 %v1256, %v1420
        %v1451 = vmul.f32 %v1257, %v1420
        %v1452 = vmul.f32 %v1258, %v1420
        %v1453 = vadd.f32 %v1385, %v1421
        %v1454 = vadd.f32 %v1386, %v1422
        %v1455 = vadd.f32 %v1387, %v1423
        %v1456 = vadd.f32 %v1388, %v1424
        %v1457 = vadd.f32 %v1389, %v1425
        %v1458 = vadd.f32 %v1390, %v1426
        %v1459 = vadd.f32 %v1391, %v1427
        %v1460 = vadd.f32 %v1392, %v1428
        %v1461 = vadd.f32 %v1393, %v1429
        %v1462 = vadd.f32 %v1394, %v1430
        %v1463 = vadd.f32 %v1395, %v1431
        %v1464 = vadd.f32 %v1396, %v1432
        %v1465 = vadd.f32 %v1397, %v1433
        %v1466 = vadd.f32 %v1398, %v1434
        %v1467 = vadd.f32 %v1399, %v1435
        %v1468 = vadd.f32 %v1400, %v1436
        %v1469 = vadd.f32 %v1401, %v1437
        %v1470 = vadd.f32 %v1402, %v1438
        %v1471 = vadd.f32 %v1403, %v1439
        %v1472 = vadd.f32 %v1404, %v1440
        %v1473 = vadd.f32 %v1405, %v1441
        %v1474 = vadd.f32 %v1406, %v1442
        %v1475 = vadd.f32 %v1407, %v1443
        %v1476 = vadd.f32 %v1408, %v1444
        %v1477 = vadd.f32 %v1409, %v1445
        %v1478 = vadd.f32 %v1410, %v1446
        %v1479 = vadd.f32 %v1411, %v1447
        %v1480 = vadd.f32 %v1412, %v1448
        %v1481 = vadd.f32 %v1413, %v1449
        %v1482 = vadd.f32 %v1414, %v1450
        %v1483 = vadd.f32 %v1415, %v1451
        %v1484 = vadd.f32 %v1416, %v1452
        %1485 = vst [vmem:[#allocation3] sm:$0xff] %v1453
        %1486 = vst [vmem:[#allocation3 + $0x8] sm:$0xff] %v1454
        %1487 = vst [vmem:[#allocation3 + $0x10] sm:$0xff] %v1455
        %1488 = vst [vmem:[#allocation3 + $0x18] sm:$0xff] %v1456
        %1489 = vst [vmem:[#allocation3 + $0x20] sm:$0xff] %v1457
        %1490 = vst [vmem:[#allocation3 + $0x28] sm:$0xff] %v1458
        %1491 = vst [vmem:[#allocation3 + $0x30] sm:$0xff] %v1459
        %1492 = vst [vmem:[#allocation3 + $0x38] sm:$0xff] %v1460
        %1493 = vst [vmem:[#allocation3 + $0x40] sm:$0xff] %v1461
        %1494 = vst [vmem:[#allocation3 + $0x48] sm:$0xff] %v1462
        %1495 = vst [vmem:[#allocation3 + $0x50] sm:$0xff] %v1463
        %1496 = vst [vmem:[#allocation3 + $0x58] sm:$0xff] %v1464
        %1497 = vst [vmem:[#allocation3 + $0x60] sm:$0xff] %v1465
        %1498 = vst [vmem:[#allocation3 + $0x68] sm:$0xff] %v1466
        %1499 = vst [vmem:[#allocation3 + $0x70] sm:$0xff] %v1467
        %1500 = vst [vmem:[#allocation3 + $0x78] sm:$0xff] %v1468
        %1501 = vst [vmem:[#allocation3 + $0x80] sm:$0xff] %v1469
        %1502 = vst [vmem:[#allocation3 + $0x88] sm:$0xff] %v1470
        %1503 = vst [vmem:[#allocation3 + $0x90] sm:$0xff] %v1471
        %1504 = vst [vmem:[#allocation3 + $0x98] sm:$0xff] %v1472
        %1505 = vst [vmem:[#allocation3 + $0xa0] sm:$0xff] %v1473
        %1506 = vst [vmem:[#allocation3 + $0xa8] sm:$0xff] %v1474
        %1507 = vst [vmem:[#allocation3 + $0xb0] sm:$0xff] %v1475
        %1508 = vst [vmem:[#allocation3 + $0xb8] sm:$0xff] %v1476
        %1509 = vst [vmem:[#allocation3 + $0xc0] sm:$0xff] %v1477
        %1510 = vst [vmem:[#allocation3 + $0xc8] sm:$0xff] %v1478
        %1511 = vst [vmem:[#allocation3 + $0xd0] sm:$0xff] %v1479
        %1512 = vst [vmem:[#allocation3 + $0xd8] sm:$0xff] %v1480
        %1513 = vst [vmem:[#allocation3 + $0xe0] sm:$0xff] %v1481
        %1514 = vst [vmem:[#allocation3 + $0xe8] sm:$0xff] %v1482
        %1515 = vst [vmem:[#allocation3 + $0xf0] sm:$0xff] %v1483
        %1516 = vst [vmem:[#allocation3 + $0xf8] sm:$0xff] %v1484
        %v1517 = vld [vmem:[%s686 + $0x2] sm:$0x1]
        %v1518 = vld [vmem:[#allocation3] sm:$0xff]
        %v1519 = vld [vmem:[#allocation3 + $0x8] sm:$0xff]
        %v1520 = vld [vmem:[#allocation3 + $0x10] sm:$0xff]
        %v1521 = vld [vmem:[#allocation3 + $0x18] sm:$0xff]
        %v1522 = vld [vmem:[#allocation3 + $0x20] sm:$0xff]
        %v1523 = vld [vmem:[#allocation3 + $0x28] sm:$0xff]
        %v1524 = vld [vmem:[#allocation3 + $0x30] sm:$0xff]
        %v1525 = vld [vmem:[#allocation3 + $0x38] sm:$0xff]
        %v1526 = vld [vmem:[#allocation3 + $0x40] sm:$0xff]
        %v1527 = vld [vmem:[#allocation3 + $0x48] sm:$0xff]
        %v1528 = vld [vmem:[#allocation3 + $0x50] sm:$0xff]
        %v1529 = vld [vmem:[#allocation3 + $0x58] sm:$0xff]
        %v1530 = vld [vmem:[#allocation3 + $0x60] sm:$0xff]
        %v1531 = vld [vmem:[#allocation3 + $0x68] sm:$0xff]
        %v1532 = vld [vmem:[#allocation3 + $0x70] sm:$0xff]
        %v1533 = vld [vmem:[#allocation3 + $0x78] sm:$0xff]
        %v1534 = vld [vmem:[#allocation3 + $0x80] sm:$0xff]
        %v1535 = vld [vmem:[#allocation3 + $0x88] sm:$0xff]
        %v1536 = vld [vmem:[#allocation3 + $0x90] sm:$0xff]
        %v1537 = vld [vmem:[#allocation3 + $0x98] sm:$0xff]
        %v1538 = vld [vmem:[#allocation3 + $0xa0] sm:$0xff]
        %v1539 = vld [vmem:[#allocation3 + $0xa8] sm:$0xff]
        %v1540 = vld [vmem:[#allocation3 + $0xb0] sm:$0xff]
        %v1541 = vld [vmem:[#allocation3 + $0xb8] sm:$0xff]
        %v1542 = vld [vmem:[#allocation3 + $0xc0] sm:$0xff]
        %v1543 = vld [vmem:[#allocation3 + $0xc8] sm:$0xff]
        %v1544 = vld [vmem:[#allocation3 + $0xd0] sm:$0xff]
        %v1545 = vld [vmem:[#allocation3 + $0xd8] sm:$0xff]
        %v1546 = vld [vmem:[#allocation3 + $0xe0] sm:$0xff]
        %v1547 = vld [vmem:[#allocation3 + $0xe8] sm:$0xff]
        %v1548 = vlaneseq
        %v1549 = vshrl.u32 %v1548, 7
        %v1550 = vsub.s32 0, %v1549
        %v1551 = vrot.slane %v1517, %v1550
        %v1552 = vmul.f32 %v1229, %v1551
        %v1553 = vmul.f32 %v1230, %v1551
        %v1554 = vmul.f32 %v1231, %v1551
        %v1555 = vmul.f32 %v1232, %v1551
        %v1556 = vmul.f32 %v1233, %v1551
        %v1557 = vmul.f32 %v1234, %v1551
        %v1558 = vmul.f32 %v1235, %v1551
        %v1559 = vmul.f32 %v1236, %v1551
        %v1560 = vmul.f32 %v1237, %v1551
        %v1561 = vmul.f32 %v1238, %v1551
        %v1562 = vmul.f32 %v1239, %v1551
        %v1563 = vmul.f32 %v1240, %v1551
        %v1564 = vmul.f32 %v1241, %v1551
        %v1565 = vmul.f32 %v1242, %v1551
        %v1566 = vmul.f32 %v1243, %v1551
        %v1567 = vmul.f32 %v1244, %v1551
        %v1568 = vmul.f32 %v1245, %v1551
        %v1569 = vmul.f32 %v1246, %v1551
        %v1570 = vmul.f32 %v1247, %v1551
        %v1571 = vmul.f32 %v1248, %v1551
        %v1572 = vmul.f32 %v1249, %v1551
        %v1573 = vmul.f32 %v1250, %v1551
        %v1574 = vmul.f32 %v1251, %v1551
        %v1575 = vmul.f32 %v1252, %v1551
        %v1576 = vmul.f32 %v1253, %v1551
        %v1577 = vmul.f32 %v1254, %v1551
        %v1578 = vmul.f32 %v1255, %v1551
        %v1579 = vmul.f32 %v1256, %v1551
        %v1580 = vmul.f32 %v1257, %v1551
        %v1581 = vmul.f32 %v1258, %v1551
        %v1582 = vadd.f32 %v1518, %v1552
        %v1583 = vadd.f32 %v1519, %v1553
        %v1584 = vadd.f32 %v1520, %v1554
        %v1585 = vadd.f32 %v1521, %v1555
        %v1586 = vadd.f32 %v1522, %v1556
        %v1587 = vadd.f32 %v1523, %v1557
        %v1588 = vadd.f32 %v1524, %v1558
        %v1589 = vadd.f32 %v1525, %v1559
        %v1590 = vadd.f32 %v1526, %v1560
        %v1591 = vadd.f32 %v1527, %v1561
        %v1592 = vadd.f32 %v1528, %v1562
        %v1593 = vadd.f32 %v1529, %v1563
        %v1594 = vadd.f32 %v1530, %v1564
        %v1595 = vadd.f32 %v1531, %v1565
        %v1596 = vadd.f32 %v1532, %v1566
        %v1597 = vadd.f32 %v1533, %v1567
        %v1598 = vadd.f32 %v1534, %v1568
        %v1599 = vadd.f32 %v1535, %v1569
        %v1600 = vadd.f32 %v1536, %v1570
        %v1601 = vadd.f32 %v1537, %v1571
        %v1602 = vadd.f32 %v1538, %v1572
        %v1603 = vadd.f32 %v1539, %v1573
        %v1604 = vadd.f32 %v1540, %v1574
        %v1605 = vadd.f32 %v1541, %v1575
        %v1606 = vadd.f32 %v1542, %v1576
        %v1607 = vadd.f32 %v1543, %v1577
        %v1608 = vadd.f32 %v1544, %v1578
        %v1609 = vadd.f32 %v1545, %v1579
        %v1610 = vadd.f32 %v1546, %v1580
        %v1611 = vadd.f32 %v1547, %v1581
        %1612 = vst [vmem:[#allocation3] sm:$0xff] %v1582
        %1613 = vst [vmem:[#allocation3 + $0x8] sm:$0xff] %v1583
        %1614 = vst [vmem:[#allocation3 + $0x10] sm:$0xff] %v1584
        %1615 = vst [vmem:[#allocation3 + $0x18] sm:$0xff] %v1585
        %1616 = vst [vmem:[#allocation3 + $0x20] sm:$0xff] %v1586
        %1617 = vst [vmem:[#allocation3 + $0x28] sm:$0xff] %v1587
        %1618 = vst [vmem:[#allocation3 + $0x30] sm:$0xff] %v1588
        %1619 = vst [vmem:[#allocation3 + $0x38] sm:$0xff] %v1589
        %1620 = vst [vmem:[#allocation3 + $0x40] sm:$0xff] %v1590
        %1621 = vst [vmem:[#allocation3 + $0x48] sm:$0xff] %v1591
        %1622 = vst [vmem:[#allocation3 + $0x50] sm:$0xff] %v1592
        %1623 = vst [vmem:[#allocation3 + $0x58] sm:$0xff] %v1593
        %1624 = vst [vmem:[#allocation3 + $0x60] sm:$0xff] %v1594
        %1625 = vst [vmem:[#allocation3 + $0x68] sm:$0xff] %v1595
        %1626 = vst [vmem:[#allocation3 + $0x70] sm:$0xff] %v1596
        %1627 = vst [vmem:[#allocation3 + $0x78] sm:$0xff] %v1597
        %1628 = vst [vmem:[#allocation3 + $0x80] sm:$0xff] %v1598
        %1629 = vst [vmem:[#allocation3 + $0x88] sm:$0xff] %v1599
        %1630 = vst [vmem:[#allocation3 + $0x90] sm:$0xff] %v1600
        %1631 = vst [vmem:[#allocation3 + $0x98] sm:$0xff] %v1601
        %1632 = vst [vmem:[#allocation3 + $0xa0] sm:$0xff] %v1602
        %1633 = vst [vmem:[#allocation3 + $0xa8] sm:$0xff] %v1603
        %1634 = vst [vmem:[#allocation3 + $0xb0] sm:$0xff] %v1604
        %1635 = vst [vmem:[#allocation3 + $0xb8] sm:$0xff] %v1605
        %1636 = vst [vmem:[#allocation3 + $0xc0] sm:$0xff] %v1606
        %1637 = vst [vmem:[#allocation3 + $0xc8] sm:$0xff] %v1607
        %1638 = vst [vmem:[#allocation3 + $0xd0] sm:$0xff] %v1608
        %1639 = vst [vmem:[#allocation3 + $0xd8] sm:$0xff] %v1609
        %1640 = vst [vmem:[#allocation3 + $0xe0] sm:$0xff] %v1610
        %1641 = vst [vmem:[#allocation3 + $0xe8] sm:$0xff] %v1611
        %v1642 = vld [vmem:[#allocation3] sm:$0xff]
        %v1643 = vld [vmem:[#allocation3 + $0x8] sm:$0xff]
        %v1644 = vld [vmem:[#allocation3 + $0x10] sm:$0xff]
        %v1645 = vld [vmem:[#allocation3 + $0x18] sm:$0xff]
        %v1646 = vld [vmem:[#allocation3 + $0x20] sm:$0xff]
        %v1647 = vld [vmem:[#allocation3 + $0x28] sm:$0xff]
        %v1648 = vld [vmem:[#allocation3 + $0x30] sm:$0xff]
        %v1649 = vld [vmem:[#allocation3 + $0x38] sm:$0xff]
        %v1650 = vld [vmem:[#allocation3 + $0x40] sm:$0xff]
        %v1651 = vld [vmem:[#allocation3 + $0x48] sm:$0xff]
        %v1652 = vld [vmem:[#allocation3 + $0x50] sm:$0xff]
        %v1653 = vld [vmem:[#allocation3 + $0x58] sm:$0xff]
        %v1654 = vld [vmem:[#allocation3 + $0x60] sm:$0xff]
        %v1655 = vld [vmem:[#allocation3 + $0x68] sm:$0xff]
        %v1656 = vld [vmem:[#allocation3 + $0x70] sm:$0xff]
        %v1657 = vld [vmem:[#allocation3 + $0x78] sm:$0xff]
        %v1658 = vld [vmem:[#allocation3 + $0x80] sm:$0xff]
        %v1659 = vld [vmem:[#allocation3 + $0x88] sm:$0xff]
        %v1660 = vld [vmem:[#allocation3 + $0x90] sm:$0xff]
        %v1661 = vld [vmem:[#allocation3 + $0x98] sm:$0xff]
        %v1662 = vld [vmem:[#allocation3 + $0xa0] sm:$0xff]
        %v1663 = vld [vmem:[#allocation3 + $0xa8] sm:$0xff]
        %v1664 = vld [vmem:[#allocation3 + $0xb0] sm:$0xff]
        %v1665 = vld [vmem:[#allocation3 + $0xb8] sm:$0xff]
        %v1666 = vld [vmem:[#allocation3 + $0xc0] sm:$0xff]
        %v1667 = vld [vmem:[#allocation3 + $0xc8] sm:$0xff]
        %v1668 = vld [vmem:[#allocation3 + $0xd0] sm:$0xff]
        %v1669 = vld [vmem:[#allocation3 + $0xd8] sm:$0xff]
        %v1670 = vld [vmem:[#allocation3 + $0xe0] sm:$0xff]
        %v1671 = vld [vmem:[#allocation3 + $0xe8] sm:$0xff]
        %v1672 = vld [vmem:[#allocation3 + $0xf0] sm:$0xff]
        %v1673 = vld [vmem:[#allocation3 + $0xf8] sm:$0xff]
        %1674 = vst [vmem:[%s255] sm:$0xff] %v1642
        %1675 = vst [vmem:[%s255 + $0x8] sm:$0xff] %v1643
        %1676 = vst [vmem:[%s255 + $0x10] sm:$0xff] %v1644
        %1677 = vst [vmem:[%s255 + $0x18] sm:$0xff] %v1645
        %1678 = vst [vmem:[%s255 + $0x20] sm:$0xff] %v1646
        %1679 = vst [vmem:[%s255 + $0x28] sm:$0xff] %v1647
        %1680 = vst [vmem:[%s255 + $0x30] sm:$0xff] %v1648
        %1681 = vst [vmem:[%s255 + $0x38] sm:$0xff] %v1649
        %1682 = vst [vmem:[%s255 + $0x40] sm:$0xff] %v1650
        %1683 = vst [vmem:[%s255 + $0x48] sm:$0xff] %v1651
        %1684 = vst [vmem:[%s255 + $0x50] sm:$0xff] %v1652
        %1685 = vst [vmem:[%s255 + $0x58] sm:$0xff] %v1653
        %1686 = vst [vmem:[%s255 + $0x60] sm:$0xff] %v1654
        %1687 = vst [vmem:[%s255 + $0x68] sm:$0xff] %v1655
        %1688 = vst [vmem:[%s255 + $0x70] sm:$0xff] %v1656
        %1689 = vst [vmem:[%s255 + $0x78] sm:$0xff] %v1657
        %1690 = vst [vmem:[%s255 + $0x80] sm:$0xff] %v1658
        %1691 = vst [vmem:[%s255 + $0x88] sm:$0xff] %v1659
        %1692 = vst [vmem:[%s255 + $0x90] sm:$0xff] %v1660
        %1693 = vst [vmem:[%s255 + $0x98] sm:$0xff] %v1661
        %1694 = vst [vmem:[%s255 + $0xa0] sm:$0xff] %v1662
        %1695 = vst [vmem:[%s255 + $0xa8] sm:$0xff] %v1663
        %1696 = vst [vmem:[%s255 + $0xb0] sm:$0xff] %v1664
        %1697 = vst [vmem:[%s255 + $0xb8] sm:$0xff] %v1665
        %1698 = vst [vmem:[%s255 + $0xc0] sm:$0xff] %v1666
        %1699 = vst [vmem:[%s255 + $0xc8] sm:$0xff] %v1667
        %1700 = vst [vmem:[%s255 + $0xd0] sm:$0xff] %v1668
        %1701 = vst [vmem:[%s255 + $0xd8] sm:$0xff] %v1669
        %1702 = vst [vmem:[%s255 + $0xe0] sm:$0xff] %v1670
        %1703 = vst [vmem:[%s255 + $0xe8] sm:$0xff] %v1671
        %1704 = vst [vmem:[%s255 + $0xf0] sm:$0xff] %v1672
        %1705 = vst [vmem:[%s255 + $0xf8] sm:$0xff] %v1673
        %s1706 = sand.u32 %s125, 1
        %s1707 = scalar_lea.sflag [#allocation6], %s1706
        %s1708 = sand.u32 %s125, 1
        %s1709 = smul.addr %s1708, 256
        %s1710 = scalar_lea.vmem [#allocation9], %s1709
        // Predicated region
        $region41: #{tpu_custom_call.1} parent=31 // pred_check
          %p1711 = pneg %p135
        $region42: #{tpu_custom_call.1} parent=31 // pred_check_branch
          %1713 = sbr.rel (%p1711) target = $region44
        $region43: #{tpu_custom_call.1} parent=31 // pred_region
          %s1715 = ssub.s32 4096, 4096
          %1716 = vsyncadd %s1707, %s1715
          %s1717 = smul.addr %s27, 64
          %s1718 = sadd.s32 %s28, %s1717
          %s1719 = smul.addr %s1718, 128
          %s1720 = scalar_lea.hbm %s3, %s1719
          %s1721 = sshll.u32 %s1710, 4
          %s1722 = int_to_ptr.vmem [resolvable:$true] %s1721
          %1727 = dma.vmem_to_hbm [thread:$0]  %s1722, 4096, %s1720, %s1707, 128, 256, 8
        $region44: #{tpu_custom_call.1} parent=31 // pred_fallthru
          _
      $region32: #{tpu_custom_call.1} parent=5 // pred_fallthru
        _
      %p1728 = scmp.le.s32.totalorder 2, %s18
      // Predicated region
      $region45: #{tpu_custom_call.1} parent=5 // pred_check
        %p1729 = pneg %p1728
      $region46: #{tpu_custom_call.1} parent=5 // pred_check_branch
        %1731 = sbr.rel (%p1729) target = $region48
      $region47: #{tpu_custom_call.1} parent=5 // pred_region
        %s1732 = ssub.s32 %s18, 2
        // Predicated region
        $region49: #{tpu_custom_call.1} parent=47 // pred_check
          %p1733 = pneg %p141
        $region50: #{tpu_custom_call.1} parent=47 // pred_check_branch
          %1735 = sbr.rel (%p1733) target = $region52
        $region51: #{tpu_custom_call.1} parent=47 // pred_region
          %s1736 = sand.u32 %s126, 1
          %s1737 = scalar_lea.sflag [#allocation6], %s1736
          %s1738 = sand.u32 %s126, 1
          %s1739 = smul.addr %s1738, 256
          %s1740 = scalar_lea.vmem [#allocation9], %s1739
          %1741 = dma.done %s1737, 4096
        $region52: #{tpu_custom_call.1} parent=47 // pred_fallthru
          _
      $region48: #{tpu_custom_call.1} parent=5 // pred_fallthru
        _
    $region6: #{tpu_custom_call.1} parent=1 // loop_footer
      %s22 = sadd.s32 1, %s18
    $region7: #{tpu_custom_call.1} parent=1 // loop_footer_branch
      %17 = sbr.rel target = $region3
    $region8: #{tpu_custom_call.1} parent=1 // loop_exit
      _
    %1742 = vsyncpa [#allocation5], 1
    %s1743 = scalar_lea.sflag [#allocation5], 1
    %1744 = vsyncpa %s1743, 1
    %1745 = vsyncpa [#allocation8], 1
    %s1746 = scalar_lea.sflag [#allocation8], 1
    %1747 = vsyncpa %s1746, 1
    %1748 = vsyncpa [#allocation6], 1
    %s1749 = scalar_lea.sflag [#allocation6], 1
    %1750 = vsyncpa %s1749, 1

</llo_original>
